<compile_context>
chip_gen: v7x
topology: tpu7x:2x2x1
jax: 0.10.0
libtpu: 0.0.40
codegen_flags: <defaults>
</compile_context>

<pallas_src>
import functools

import jax
import jax.numpy as jnp
from jax.experimental import pallas as pl
from jax.experimental.pallas import tpu as pltpu

_LANE = 128
_SUBLANE = 8


def _round_up(x, m):
    return (x + m - 1) // m * m


def _cdiv(a, b):
    return (a + b - 1) // b


def _asc_kernel(x_ref, wdw_ref, wpw_ref, bf_ref, o_ref, *,
                K, dil, tile_h, Wo, C, O, pregathered, compute_dtype):
    """Fused depthwise dilated conv + 1x1 pointwise conv for one row-tile.

    x_ref   : (tile_h + dil*(K-1), Wp, C)   halo row strip       (stride == 1)
              (K*K, tile_h, Wo, C)          pre-gathered taps    (stride  > 1)
    wdw_ref : (K*K, C)   f32 depthwise weights, one row per tap
    wpw_ref : (C, O)     pointwise weights (bf16 or f32)
    bf_ref  : (1, O)     f32 fused bias  (b_dw @ W_pw + b_pw)
    o_ref   : (tile_h, Wo, O)
    """
    acc = None
    for kh in range(K):
        for kw in range(K):
            t = kh * K + kw
            w_tap = wdw_ref[t, :][None, None, :]                    # (1,1,C) f32
            if pregathered:
                patch = x_ref[t]                                    # (tile_h, Wo, C)
            else:
                # Contiguous (static-offset) loads from the halo strip.
                patch = x_ref[pl.ds(kh * dil, tile_h),
                              pl.ds(kw * dil, Wo), :]
            term = patch.astype(jnp.float32) * w_tap
            acc = term if acc is None else acc + term

    # Pointwise 1x1 conv over channels on the MXU (bf16 when the model is
    # bf16, f32 accumulation either way) + fused bias.
    lhs = acc.reshape(tile_h * Wo, C).astype(compute_dtype)         # Wo % 8 == 0 -> layout-free
    out = jnp.dot(lhs, wpw_ref[...], preferred_element_type=jnp.float32)
    out = out + bf_ref[...]
    o_ref[...] = out.reshape(tile_h, Wo, O).astype(o_ref.dtype)


def atrous_separable_conv(x_nchw, w_dw, b_dw, w_pw, b_pw, *,
                          stride=1, padding=0, dilation=1,
                          compute_dtype=None, target_m=1024):
    """Equivalent of AtrousSeparableConvolution.forward (NCHW in / NCHW out)."""
    N, C, H, W = x_nchw.shape
    K = w_dw.shape[2]
    O = w_pw.shape[0]
    dil = int(dilation)
    span = dil * (K - 1)
    Ho = (H + 2 * padding - span - 1) // stride + 1
    Wo = (W + 2 * padding - span - 1) // stride + 1
    if Ho <= 0 or Wo <= 0:
        raise ValueError("empty output spatial shape")

    in_dtype = x_nchw.dtype
    if compute_dtype is None:
        # bf16 MXU path for bf16 models, exact f32 path otherwise.
        compute_dtype = jnp.bfloat16 if in_dtype == jnp.bfloat16 else jnp.float32
    if b_dw is None:
        b_dw = jnp.zeros((C,), jnp.float32)
    if b_pw is None:
        b_pw = jnp.zeros((O,), jnp.float32)

    Cp = _round_up(C, _LANE)
    Op = _round_up(O, _LANE)
    Wo_pad = _round_up(Wo, _SUBLANE)      # layout-free reshapes + unmasked stores

    x_bytes = jnp.dtype(in_dtype).itemsize
    w_elt = jnp.dtype(compute_dtype).itemsize
    pregathered = stride != 1

    # ---- tile_h: target ~target_m MXU rows per grid step, bounded by a VMEM
    #      budget (double-buffered in/out blocks + weights + f32 temporaries).
    if pregathered:
        per_row_in, halo_rows = K * K * Wo_pad * Cp * x_bytes, 0
    else:
        per_row_in, halo_rows = (Wo_pad + span) * Cp * x_bytes, span
    per_row_out = Wo_pad * Op * x_bytes
    per_row_tmp = Wo_pad * (Cp + Op) * 4               # f32 acc + matmul result
    w_bytes = K * K * Cp * 4 + Cp * Op * w_elt + Op * 4

    def vmem_need(th):
        return (2 * (th + halo_rows) * per_row_in + 2 * th * per_row_out
                + th * per_row_tmp + w_bytes)

    budget = 30 << 20                                  # keeps v7x (64 MiB) happy
    tile_h = max(1, min(Ho, _cdiv(target_m, Wo_pad)))
    while tile_h > 1 and vmem_need(tile_h) > budget:
        tile_h -= 1
    n_ht = _cdiv(Ho, tile_h)
    Ho_pad = n_ht * tile_h                             # ragged last tile -> pad, slice later

    # ---- NCHW -> NHWC; spatial zero-pad (conv padding + ragged-tile/sublane
    #      padding); channel pad to a lane multiple.  Model dtype is preserved.
    need_h = (Ho_pad - 1) * stride + span + 1
    need_w = (Wo_pad - 1) * stride + span + 1
    extra_h = max(0, need_h - (H + 2 * padding))
    extra_w = max(0, need_w - (W + 2 * padding))
    x = jnp.transpose(x_nchw, (0, 2, 3, 1))
    x = jnp.pad(x, ((0, 0), (padding, padding + extra_h),
                    (padding, padding + extra_w), (0, Cp - C)))

    # ---- weights:  depthwise (C,1,K,K) -> (K*K, Cp) f32  (tap rows, lanes=C)
    #                pointwise (O,C,1,1) -> (Cp, Op) in the matmul dtype
    wdw = jnp.transpose(w_dw[:, 0, :, :], (1, 2, 0)).reshape(K * K, C)
    wdw = jnp.pad(wdw, ((0, 0), (0, Cp - C))).astype(jnp.float32)
    wpw_f32 = jnp.transpose(w_pw[:, :, 0, 0], (1, 0)).astype(jnp.float32)   # (C, O)
    bias_f = b_dw.astype(jnp.float32) @ wpw_f32 + b_pw.astype(jnp.float32)  # fold b_dw
    bias_f = jnp.pad(bias_f, (0, Op - O)).reshape(1, Op)
    wpw = jnp.pad(wpw_f32, ((0, Cp - C), (0, Op - O))).astype(compute_dtype)

    # ---- blocked input
    if not pregathered:
        # Overlapping halo row strips -> normal Blocked axis.
        s_h = tile_h + span
        rows = jnp.arange(n_ht)[:, None] * tile_h + jnp.arange(s_h)[None, :]
        strips = x[:, rows]                                   # (N, n_ht, s_h, Wp, Cp)
        Wp = strips.shape[3]
        x_arg = strips.reshape(N * n_ht, s_h, Wp, Cp)
        in_spec = pl.BlockSpec((None, s_h, Wp, Cp),
                               lambda n, ht: (n * n_ht + ht, 0, 0, 0))
    else:
        # stride > 1: pre-gather the K*K decimated taps in the wrapper so the
        # kernel never issues strided sublane loads.
        taps = []
        for kh in range(K):
            for kw in range(K):
                taps.append(
                    x[:, kh * dil: kh * dil + (Ho_pad - 1) * stride + 1: stride,
                         kw * dil: kw * dil + (Wo_pad - 1) * stride + 1: stride, :])
        x_arg = jnp.stack(taps, axis=1)                       # (N, K*K, Ho_pad, Wo_pad, Cp)
        in_spec = pl.BlockSpec((None, K * K, tile_h, Wo_pad, Cp),
                               lambda n, ht: (n, 0, ht, 0, 0))

    # ---- generation-aware VMEM limit: real need + headroom, capped at 40 MiB
    #      (headroom on v7x's 64 MiB); bumped only if the blocks need more.
    need_b = vmem_need(tile_h)
    vmem_limit = int(min(max(need_b + (8 << 20), 24 << 20), 40 << 20))
    if need_b + (4 << 20) > vmem_limit:
        vmem_limit = int(need_b + (8 << 20))

    kern = functools.partial(
        _asc_kernel, K=K, dil=dil, tile_h=tile_h, Wo=Wo_pad, C=Cp, O=Op,
        pregathered=pregathered, compute_dtype=compute_dtype)

    out_nhwc = pl.pallas_call(
        kern,
        out_shape=jax.ShapeDtypeStruct((N, Ho_pad, Wo_pad, Op), in_dtype),
        grid=(N, n_ht),
        in_specs=[
            in_spec,
            pl.BlockSpec((K * K, Cp), lambda n, ht: (0, 0)),
            pl.BlockSpec((Cp, Op), lambda n, ht: (0, 0)),
            pl.BlockSpec((1, Op), lambda n, ht: (0, 0)),
        ],
        out_specs=pl.BlockSpec((None, tile_h, Wo_pad, Op),
                               lambda n, ht: (n, ht, 0, 0)),
        compiler_params=pltpu.CompilerParams(
            # Input is properly blocked now, so megacore sharding of either
            # axis on v7x only duplicates halo rows, never a whole plane.
            dimension_semantics=("parallel", "parallel"),
            vmem_limit_bytes=vmem_limit,
        ),
    )(x_arg, wdw, wpw, bias_f)

    # TODO(synk): add a channel-block ("arbitrary") grid axis with an f32 VMEM
    # accumulator for very large C/O (DeepLab heads up to 2048) and a packed
    # small-O output layout to avoid the Op=128 store amplification on v5e.
    return jnp.transpose(out_nhwc[:, :Ho, :Wo, :O], (0, 3, 1, 2))


def _reference(x, w_dw, b_dw, w_pw, b_pw, *, stride, padding, dilation):
    """Pure-JAX reference with the same semantics as the PyTorch nn.Sequential."""
    N, Cin, _, _ = x.shape
    Cout = w_pw.shape[0]
    dw = jax.lax.conv_general_dilated(
        x, w_dw, (stride, stride), [(padding, padding), (padding, padding)],
        rhs_dilation=(dilation, dilation),
        dimension_numbers=("NCHW", "OIHW", "NCHW"), feature_group_count=Cin)
    dw = dw + b_dw.reshape(1, Cin, 1, 1)
    pw = jax.lax.conv_general_dilated(
        dw, w_pw, (1, 1), [(0, 0), (0, 0)],
        dimension_numbers=("NCHW", "OIHW", "NCHW"))
    return pw + b_pw.reshape(1, Cout, 1, 1)


if __name__ == "__main__":
    key = jax.random.PRNGKey(0)
    N, Cin, H, W = 2, 4, 16, 16
    Cout, K = 8, 3

    k1, k2, k3, k4, k5 = jax.random.split(key, 5)
    x = jax.random.normal(k1, (N, Cin, H, W), jnp.float32)
    # deterministic kaiming_normal_-style init (fan_in, gain=sqrt(2)), as in _init_weight
    w_dw = jax.random.normal(k2, (Cin, 1, K, K), jnp.float32) * jnp.sqrt(2.0 / (K * K))
    w_pw = jax.random.normal(k3, (Cout, Cin, 1, 1), jnp.float32) * jnp.sqrt(2.0 / Cin)
    b_dw = jax.random.uniform(k4, (Cin,), jnp.float32, -0.1, 0.1)
    b_pw = jax.random.uniform(k5, (Cout,), jnp.float32, -0.1, 0.1)

    # 1) f32 model, the common atrous case (stride=1, dilation=2): halo-strip path.
    out = atrous_separable_conv(x, w_dw, b_dw, w_pw, b_pw,
                                stride=1, padding=2, dilation=2)
    out = jax.block_until_ready(out)
    ref = _reference(x, w_dw, b_dw, w_pw, b_pw, stride=1, padding=2, dilation=2)
    assert out.shape == ref.shape == (N, Cout, H, W)
    assert jnp.allclose(out, ref, atol=1e-4, rtol=1e-4)

    # 2) bf16 model dtype: bf16 strips + bf16 MXU matmul (f32 accumulation).
    x_bf = x.astype(jnp.bfloat16)
    out_bf = atrous_separable_conv(x_bf, w_dw, b_dw, w_pw, b_pw,
                                   stride=1, padding=2, dilation=2)
    out_bf = jax.block_until_ready(out_bf)
    ref_bf = _reference(x_bf.astype(jnp.float32), w_dw, b_dw, w_pw, b_pw,
                        stride=1, padding=2, dilation=2)
    assert out_bf.dtype == jnp.bfloat16
    assert jnp.allclose(out_bf.astype(jnp.float32), ref_bf, atol=5e-2, rtol=5e-2)

    # 3) stride=2 fallback path (pre-gathered taps, no strided sublane loads).
    out_s2 = atrous_separable_conv(x, w_dw, b_dw, w_pw, b_pw,
                                   stride=2, padding=1, dilation=1)
    out_s2 = jax.block_until_ready(out_s2)
    ref_s2 = _reference(x, w_dw, b_dw, w_pw, b_pw, stride=2, padding=1, dilation=1)
    assert out_s2.shape == ref_s2.shape
    assert jnp.allclose(out_s2, ref_s2, atol=1e-4, rtol=1e-4)

    print("KERNEL_OK")
</pallas_src>

<mosaic_0001>
module attributes {stable_mosaic.version = 11 : i64} {
  func.func @_asc_kernel(%arg0: i32, %arg1: i32, %arg2: memref<1x20x20x128xf32, #tpu.memory_space<vmem>>, %arg3: memref<9x128xf32, #tpu.memory_space<vmem>>, %arg4: memref<128x128xf32, #tpu.memory_space<vmem>>, %arg5: memref<1x128xf32, #tpu.memory_space<vmem>>, %arg6: memref<1x16x16x128xf32, #tpu.memory_space<vmem>>) attributes {dimension_semantics = [#tpu.dimension_semantics<parallel>, #tpu.dimension_semantics<parallel>], iteration_bounds = array<i64: 2, 1>, scalar_prefetch = 0 : i64, scratch_operands = 0 : i64, tpu.core_type = #tpu.core_type<tc>, window_params = [{transform_indices = @transform_0, window_bounds = array<i64: 1, 20, 20, 128>}, {pipeline_mode = #tpu.pipeline_mode<synchronous>, transform_indices = @transform_1, window_bounds = array<i64: 9, 128>}, {pipeline_mode = #tpu.pipeline_mode<synchronous>, transform_indices = @transform_2, window_bounds = array<i64: 128, 128>}, {pipeline_mode = #tpu.pipeline_mode<synchronous>, transform_indices = @transform_3, window_bounds = array<i64: 1, 128>}, {transform_indices = @transform_4, window_bounds = array<i64: 1, 16, 16, 128>}]} {
    %c0 = arith.constant 0 : index
    %c0_0 = arith.constant 0 : index
    %0 = vector.load %arg3[%c0, %c0_0] : memref<9x128xf32, #tpu.memory_space<vmem>>, vector<1x128xf32>
    %1 = vector.shape_cast %0 : vector<1x128xf32> to vector<128xf32>
    %2 = vector.shape_cast %1 : vector<128xf32> to vector<1x1x128xf32>
    %c0_1 = arith.constant 0 : index
    %c0_2 = arith.constant 0 : index
    %c0_3 = arith.constant 0 : index
    %c0_4 = arith.constant 0 : index
    %3 = vector.load %arg2[%c0_1, %c0_2, %c0_3, %c0_4] : memref<1x20x20x128xf32, #tpu.memory_space<vmem>>, vector<1x16x16x128xf32>
    %4 = vector.shape_cast %3 : vector<1x16x16x128xf32> to vector<16x16x128xf32>
    %5 = vector.broadcast %2 : vector<1x1x128xf32> to vector<16x16x128xf32>
    %6 = arith.mulf %4, %5 : vector<16x16x128xf32>
    %c1 = arith.constant 1 : index
    %c0_5 = arith.constant 0 : index
    %7 = vector.load %arg3[%c1, %c0_5] : memref<9x128xf32, #tpu.memory_space<vmem>>, vector<1x128xf32>
    %8 = vector.shape_cast %7 : vector<1x128xf32> to vector<128xf32>
    %9 = vector.shape_cast %8 : vector<128xf32> to vector<1x1x128xf32>
    %c0_6 = arith.constant 0 : index
    %c0_7 = arith.constant 0 : index
    %c2 = arith.constant 2 : index
    %c0_8 = arith.constant 0 : index
    %10 = vector.load %arg2[%c0_6, %c0_7, %c2, %c0_8] : memref<1x20x20x128xf32, #tpu.memory_space<vmem>>, vector<1x16x16x128xf32>
    %11 = vector.shape_cast %10 : vector<1x16x16x128xf32> to vector<16x16x128xf32>
    %12 = vector.broadcast %9 : vector<1x1x128xf32> to vector<16x16x128xf32>
    %13 = arith.mulf %11, %12 : vector<16x16x128xf32>
    %14 = arith.addf %6, %13 : vector<16x16x128xf32>
    %c2_9 = arith.constant 2 : index
    %c0_10 = arith.constant 0 : index
    %15 = vector.load %arg3[%c2_9, %c0_10] : memref<9x128xf32, #tpu.memory_space<vmem>>, vector<1x128xf32>
    %16 = vector.shape_cast %15 : vector<1x128xf32> to vector<128xf32>
    %17 = vector.shape_cast %16 : vector<128xf32> to vector<1x1x128xf32>
    %c0_11 = arith.constant 0 : index
    %c0_12 = arith.constant 0 : index
    %c4 = arith.constant 4 : index
    %c0_13 = arith.constant 0 : index
    %18 = vector.load %arg2[%c0_11, %c0_12, %c4, %c0_13] : memref<1x20x20x128xf32, #tpu.memory_space<vmem>>, vector<1x16x16x128xf32>
    %19 = vector.shape_cast %18 : vector<1x16x16x128xf32> to vector<16x16x128xf32>
    %20 = vector.broadcast %17 : vector<1x1x128xf32> to vector<16x16x128xf32>
    %21 = arith.mulf %19, %20 : vector<16x16x128xf32>
    %22 = arith.addf %14, %21 : vector<16x16x128xf32>
    %c3 = arith.constant 3 : index
    %c0_14 = arith.constant 0 : index
    %23 = vector.load %arg3[%c3, %c0_14] : memref<9x128xf32, #tpu.memory_space<vmem>>, vector<1x128xf32>
    %24 = vector.shape_cast %23 : vector<1x128xf32> to vector<128xf32>
    %25 = vector.shape_cast %24 : vector<128xf32> to vector<1x1x128xf32>
    %c0_15 = arith.constant 0 : index
    %c2_16 = arith.constant 2 : index
    %c0_17 = arith.constant 0 : index
    %c0_18 = arith.constant 0 : index
    %26 = vector.load %arg2[%c0_15, %c2_16, %c0_17, %c0_18] : memref<1x20x20x128xf32, #tpu.memory_space<vmem>>, vector<1x16x16x128xf32>
    %27 = vector.shape_cast %26 : vector<1x16x16x128xf32> to vector<16x16x128xf32>
    %28 = vector.broadcast %25 : vector<1x1x128xf32> to vector<16x16x128xf32>
    %29 = arith.mulf %27, %28 : vector<16x16x128xf32>
    %30 = arith.addf %22, %29 : vector<16x16x128xf32>
    %c4_19 = arith.constant 4 : index
    %c0_20 = arith.constant 0 : index
    %31 = vector.load %arg3[%c4_19, %c0_20] : memref<9x128xf32, #tpu.memory_space<vmem>>, vector<1x128xf32>
    %32 = vector.shape_cast %31 : vector<1x128xf32> to vector<128xf32>
    %33 = vector.shape_cast %32 : vector<128xf32> to vector<1x1x128xf32>
    %c0_21 = arith.constant 0 : index
    %c2_22 = arith.constant 2 : index
    %c2_23 = arith.constant 2 : index
    %c0_24 = arith.constant 0 : index
    %34 = vector.load %arg2[%c0_21, %c2_22, %c2_23, %c0_24] : memref<1x20x20x128xf32, #tpu.memory_space<vmem>>, vector<1x16x16x128xf32>
    %35 = vector.shape_cast %34 : vector<1x16x16x128xf32> to vector<16x16x128xf32>
    %36 = vector.broadcast %33 : vector<1x1x128xf32> to vector<16x16x128xf32>
    %37 = arith.mulf %35, %36 : vector<16x16x128xf32>
    %38 = arith.addf %30, %37 : vector<16x16x128xf32>
    %c5 = arith.constant 5 : index
    %c0_25 = arith.constant 0 : index
    %39 = vector.load %arg3[%c5, %c0_25] : memref<9x128xf32, #tpu.memory_space<vmem>>, vector<1x128xf32>
    %40 = vector.shape_cast %39 : vector<1x128xf32> to vector<128xf32>
    %41 = vector.shape_cast %40 : vector<128xf32> to vector<1x1x128xf32>
    %c0_26 = arith.constant 0 : index
    %c2_27 = arith.constant 2 : index
    %c4_28 = arith.constant 4 : index
    %c0_29 = arith.constant 0 : index
    %42 = vector.load %arg2[%c0_26, %c2_27, %c4_28, %c0_29] : memref<1x20x20x128xf32, #tpu.memory_space<vmem>>, vector<1x16x16x128xf32>
    %43 = vector.shape_cast %42 : vector<1x16x16x128xf32> to vector<16x16x128xf32>
    %44 = vector.broadcast %41 : vector<1x1x128xf32> to vector<16x16x128xf32>
    %45 = arith.mulf %43, %44 : vector<16x16x128xf32>
    %46 = arith.addf %38, %45 : vector<16x16x128xf32>
    %c6 = arith.constant 6 : index
    %c0_30 = arith.constant 0 : index
    %47 = vector.load %arg3[%c6, %c0_30] : memref<9x128xf32, #tpu.memory_space<vmem>>, vector<1x128xf32>
    %48 = vector.shape_cast %47 : vector<1x128xf32> to vector<128xf32>
    %49 = vector.shape_cast %48 : vector<128xf32> to vector<1x1x128xf32>
    %c0_31 = arith.constant 0 : index
    %c4_32 = arith.constant 4 : index
    %c0_33 = arith.constant 0 : index
    %c0_34 = arith.constant 0 : index
    %50 = vector.load %arg2[%c0_31, %c4_32, %c0_33, %c0_34] : memref<1x20x20x128xf32, #tpu.memory_space<vmem>>, vector<1x16x16x128xf32>
    %51 = vector.shape_cast %50 : vector<1x16x16x128xf32> to vector<16x16x128xf32>
    %52 = vector.broadcast %49 : vector<1x1x128xf32> to vector<16x16x128xf32>
    %53 = arith.mulf %51, %52 : vector<16x16x128xf32>
    %54 = arith.addf %46, %53 : vector<16x16x128xf32>
    %c7 = arith.constant 7 : index
    %c0_35 = arith.constant 0 : index
    %55 = vector.load %arg3[%c7, %c0_35] : memref<9x128xf32, #tpu.memory_space<vmem>>, vector<1x128xf32>
    %56 = vector.shape_cast %55 : vector<1x128xf32> to vector<128xf32>
    %57 = vector.shape_cast %56 : vector<128xf32> to vector<1x1x128xf32>
    %c0_36 = arith.constant 0 : index
    %c4_37 = arith.constant 4 : index
    %c2_38 = arith.constant 2 : index
    %c0_39 = arith.constant 0 : index
    %58 = vector.load %arg2[%c0_36, %c4_37, %c2_38, %c0_39] : memref<1x20x20x128xf32, #tpu.memory_space<vmem>>, vector<1x16x16x128xf32>
    %59 = vector.shape_cast %58 : vector<1x16x16x128xf32> to vector<16x16x128xf32>
    %60 = vector.broadcast %57 : vector<1x1x128xf32> to vector<16x16x128xf32>
    %61 = arith.mulf %59, %60 : vector<16x16x128xf32>
    %62 = arith.addf %54, %61 : vector<16x16x128xf32>
    %c8 = arith.constant 8 : index
    %c0_40 = arith.constant 0 : index
    %63 = vector.load %arg3[%c8, %c0_40] : memref<9x128xf32, #tpu.memory_space<vmem>>, vector<1x128xf32>
    %64 = vector.shape_cast %63 : vector<1x128xf32> to vector<128xf32>
    %65 = vector.shape_cast %64 : vector<128xf32> to vector<1x1x128xf32>
    %c0_41 = arith.constant 0 : index
    %c4_42 = arith.constant 4 : index
    %c4_43 = arith.constant 4 : index
    %c0_44 = arith.constant 0 : index
    %66 = vector.load %arg2[%c0_41, %c4_42, %c4_43, %c0_44] : memref<1x20x20x128xf32, #tpu.memory_space<vmem>>, vector<1x16x16x128xf32>
    %67 = vector.shape_cast %66 : vector<1x16x16x128xf32> to vector<16x16x128xf32>
    %68 = vector.broadcast %65 : vector<1x1x128xf32> to vector<16x16x128xf32>
    %69 = arith.mulf %67, %68 : vector<16x16x128xf32>
    %70 = arith.addf %62, %69 : vector<16x16x128xf32>
    %71 = vector.shape_cast %70 : vector<16x16x128xf32> to vector<256x128xf32>
    %c0_45 = arith.constant 0 : index
    %c0_46 = arith.constant 0 : index
    %72 = vector.load %arg4[%c0_45, %c0_46] : memref<128x128xf32, #tpu.memory_space<vmem>>, vector<128x128xf32>
    %cst = arith.constant dense<0.000000e+00> : vector<256x128xf32>
    %73 = tpu.matmul %71, %72, %cst {dimension_numbers = #tpu.dot_dimension_numbers<[1], [0], [0], [1], [0, 0, 1, 1], [], []>} : vector<256x128xf32>, vector<128x128xf32>, vector<256x128xf32> -> vector<256x128xf32>
    %c0_47 = arith.constant 0 : index
    %c0_48 = arith.constant 0 : index
    %74 = vector.load %arg5[%c0_47, %c0_48] : memref<1x128xf32, #tpu.memory_space<vmem>>, vector<1x128xf32>
    %75 = vector.broadcast %74 : vector<1x128xf32> to vector<256x128xf32>
    %76 = arith.addf %73, %75 : vector<256x128xf32>
    %77 = vector.shape_cast %76 : vector<256x128xf32> to vector<16x16x128xf32>
    %c0_49 = arith.constant 0 : index
    %c0_50 = arith.constant 0 : index
    %c0_51 = arith.constant 0 : index
    %c0_52 = arith.constant 0 : index
    %78 = vector.load %arg6[%c0_49, %c0_50, %c0_51, %c0_52] : memref<1x16x16x128xf32, #tpu.memory_space<vmem>>, vector<1x16x16x128xf32>
    %79 = vector.shape_cast %78 : vector<1x16x16x128xf32> to vector<16x16x128xf32>
    %80 = vector.shape_cast %77 : vector<16x16x128xf32> to vector<1x16x16x128xf32>
    tpu.vector_store %arg6[%c0_49, %c0_50, %c0_51, %c0_52], %80 {strides = array<i32>} : memref<1x16x16x128xf32, #tpu.memory_space<vmem>>, vector<1x16x16x128xf32>,
    return
  }
  func.func @transform_0(%arg0: i32, %arg1: i32) -> (i32, i32, i32, i32) {
    %c1_i32 = arith.constant 1 : i32
    %0 = arith.muli %arg0, %c1_i32 : i32
    %1 = arith.addi %0, %arg1 : i32
    %c0_i32 = arith.constant 0 : i32
    %c0_i32_0 = arith.constant 0 : i32
    %c0_i32_1 = arith.constant 0 : i32
    %c0_i32_2 = arith.constant 0 : i32
    return %1, %c0_i32, %c0_i32_0, %c0_i32_1 : i32, i32, i32, i32
  }
  func.func @transform_1(%arg0: i32, %arg1: i32) -> (i32, i32) {
    %c0_i32 = arith.constant 0 : i32
    %c0_i32_0 = arith.constant 0 : i32
    %c0_i32_1 = arith.constant 0 : i32
    return %c0_i32, %c0_i32_0 : i32, i32
  }
  func.func @transform_2(%arg0: i32, %arg1: i32) -> (i32, i32) {
    %c0_i32 = arith.constant 0 : i32
    %c0_i32_0 = arith.constant 0 : i32
    %c0_i32_1 = arith.constant 0 : i32
    return %c0_i32, %c0_i32_0 : i32, i32
  }
  func.func @transform_3(%arg0: i32, %arg1: i32) -> (i32, i32) {
    %c0_i32 = arith.constant 0 : i32
    %c0_i32_0 = arith.constant 0 : i32
    %c0_i32_1 = arith.constant 0 : i32
    return %c0_i32, %c0_i32_0 : i32, i32
  }
  func.func @transform_4(%arg0: i32, %arg1: i32) -> (i32, i32, i32, i32) {
    %c0_i32 = arith.constant 0 : i32
    %c0_i32_0 = arith.constant 0 : i32
    %c0_i32_1 = arith.constant 0 : i32
    return %arg0, %arg1, %c0_i32, %c0_i32_0 : i32, i32, i32, i32
  }
}

</mosaic_0001>

<llo_original>
// kernel: tpu_custom_call.1
$region0: #{tpu_custom_call.1}
  #allocation0 [shape = 'u32[]', space=smem, size = 0x4, offset = 0x4, fixed_abs, tag = 'smem constant byte address 0x4 - core index']
  #allocation1 [shape = 'u32[144,128]{1,0:T(1,128)}', space=vmem, size = 0x12000, scoped, tag = 'internal scratch']
  %s0 = inlined_call_operand.vmem [shape: f32[2,20,20,128], index: 0, kind: input, shape index: {}]
  %s1 = inlined_call_operand.vmem [shape: f32[9,128], index: 1, kind: input, shape index: {}]
  %s2 = inlined_call_operand.vmem [shape: f32[128,128], index: 2, kind: input, shape index: {}]
  %s3 = inlined_call_operand.vmem [shape: f32[1,128], index: 3, kind: input, shape index: {}]
  %s4 = inlined_call_operand.hbm [shape: f32[2,16,16,128], index: 4, kind: output, shape index: {}]
  %s5 = sld [smem:[#allocation0]]
  $region49: #{tpu_custom_call.1} parent=0
    _
  %s7 = ssub.s32 1, %s5
  %s8 = scalar_select 0, %s7, %s5
  $region1: #{tpu_custom_call.1} parent=0
    #allocation2 [shape = 'u8[262144]{0}', space=vmem, size = 0x40000, scoped, tag = 'output window, operand 0']
    #allocation3 [shape = 's32[2]{0}', space=sflag, size = 0x8, scoped, tag = 'scoped memory for tpu_custom_call.1']
    %9 = vsyncpa [#allocation3], 0
    %s10 = scalar_lea.sflag [#allocation3], 1
    %11 = vsyncpa %s10, 0
    loop: start=0, step=1, limit=4
    $region2: #{tpu_custom_call.1} parent=1 // loop_pre_header
      _
    $region3: #{tpu_custom_call.1} parent=1 // loop_header
      %s13 = sphi 0, %s17
      %p14 = scmp.ge.s32.totalorder %s13, 4
      %s20 = sphi 0, %s32
      %s21 = sphi 0, %s28
      %s22 = sphi 0, %s20
      %s23 = sphi 0, %s21
      %s24 = sphi 0, %s22
      %s25 = sphi 0, %s23
      %s37 = sphi 0, %s39
      %s40 = sphi 0, %s37
      %s41 = sphi 0, %s40
      %s57 = sphi 0, %s41
      %s61 = sphi 0, %s61
      %s63 = sphi 0, %s61
      %s64 = sphi 0, %s63
      %s78 = sphi 0, %s64
      %s82 = sphi 0, %s82
      %s84 = sphi 0, %s82
      %s85 = sphi 0, %s84
      %s99 = sphi 0, %s85
      %s103 = sphi 0, %s103
      %s105 = sphi 0, %s103
      %s106 = sphi 0, %s105
      %s120 = sphi 0, %s106
      %s128 = sphi 0, %s130
      %s131 = sphi 0, %s128
      %s132 = sphi 0, %s131
      %s148 = sphi 0, %s132
    $region4: #{tpu_custom_call.1} parent=1 // loop_header_branch
      %16 = sbr.rel (%p14) target = $region8
    $region5: #{tpu_custom_call.1} parent=1 // loop_body
      %s18 = ssub.s32 %s13, 1
      %s19 = ssub.s32 %s13, 2
      %s26 = sadd.s32 1, %s21
      %p27 = scmp.ge.s32.totalorder %s26, 1
      %s28 = scalar_select %p27, 0, %s26
      %s29 = sadd.s32 1, %s20
      %s30 = scalar_select %p27, %s29, %s20
      %p31 = scmp.ge.s32.totalorder %s30, 2
      %s32 = scalar_select %p31, 0, %s30
      %s33 = sadd.s32 %s20, %s21
      %s34 = sadd.s32 %s32, %s28
      %s35 = ssub.s32 %s33, %s34
      %p36 = scmp.eq.s32.totalorder %s35, 0
      %s38 = sadd.s32 %s37, 1
      %s39 = scalar_select %p36, %s37, %s38
      %p42 = pneg %p36
      %p43 = scmp.eq.s32.totalorder %s13, 1
      %p44 = por %p42, %p43
      %p45 = scmp.ne.s32.totalorder %s37, %s40
      %p46 = scmp.eq.s32.totalorder %s13, 0
      %p47 = por %p45, %p46
      %p48 = scmp.ne.s32.totalorder %s37, %s40
      %p49 = scmp.eq.s32.totalorder %s18, 1
      %p50 = por %p48, %p49
      %p51 = scmp.ne.s32.totalorder %s40, %s41
      %p52 = scmp.eq.s32.totalorder %s18, 0
      %p53 = por %p51, %p52
      %p54 = scmp.ne.s32.totalorder %s40, %s41
      %p55 = scmp.eq.s32.totalorder %s19, 1
      %p56 = por %p54, %p55
      %p58 = scmp.ne.s32.totalorder %s41, %s57
      %p59 = scmp.eq.s32.totalorder %s19, 0
      %p60 = por %p58, %p59
      %s62 = sadd.s32 %s61, 1
      %p65 = scmp.eq.s32.totalorder %s13, 1
      %p66 = scmp.ne.s32.totalorder %s61, %s63
      %p67 = scmp.eq.s32.totalorder %s13, 0
      %p68 = por %p66, %p67
      %p69 = scmp.ne.s32.totalorder %s61, %s63
      %p70 = scmp.eq.s32.totalorder %s18, 1
      %p71 = por %p69, %p70
      %p72 = scmp.ne.s32.totalorder %s63, %s64
      %p73 = scmp.eq.s32.totalorder %s18, 0
      %p74 = por %p72, %p73
      %p75 = scmp.ne.s32.totalorder %s63, %s64
      %p76 = scmp.eq.s32.totalorder %s19, 1
      %p77 = por %p75, %p76
      %p79 = scmp.ne.s32.totalorder %s64, %s78
      %p80 = scmp.eq.s32.totalorder %s19, 0
      %p81 = por %p79, %p80
      %s83 = sadd.s32 %s82, 1
      %p86 = scmp.eq.s32.totalorder %s13, 1
      %p87 = scmp.ne.s32.totalorder %s82, %s84
      %p88 = scmp.eq.s32.totalorder %s13, 0
      %p89 = por %p87, %p88
      %p90 = scmp.ne.s32.totalorder %s82, %s84
      %p91 = scmp.eq.s32.totalorder %s18, 1
      %p92 = por %p90, %p91
      %p93 = scmp.ne.s32.totalorder %s84, %s85
      %p94 = scmp.eq.s32.totalorder %s18, 0
      %p95 = por %p93, %p94
      %p96 = scmp.ne.s32.totalorder %s84, %s85
      %p97 = scmp.eq.s32.totalorder %s19, 1
      %p98 = por %p96, %p97
      %p100 = scmp.ne.s32.totalorder %s85, %s99
      %p101 = scmp.eq.s32.totalorder %s19, 0
      %p102 = por %p100, %p101
      %s104 = sadd.s32 %s103, 1
      %p107 = scmp.eq.s32.totalorder %s13, 1
      %p108 = scmp.ne.s32.totalorder %s103, %s105
      %p109 = scmp.eq.s32.totalorder %s13, 0
      %p110 = por %p108, %p109
      %p111 = scmp.ne.s32.totalorder %s103, %s105
      %p112 = scmp.eq.s32.totalorder %s18, 1
      %p113 = por %p111, %p112
      %p114 = scmp.ne.s32.totalorder %s105, %s106
      %p115 = scmp.eq.s32.totalorder %s18, 0
      %p116 = por %p114, %p115
      %p117 = scmp.ne.s32.totalorder %s105, %s106
      %p118 = scmp.eq.s32.totalorder %s19, 1
      %p119 = por %p117, %p118
      %p121 = scmp.ne.s32.totalorder %s106, %s120
      %p122 = scmp.eq.s32.totalorder %s19, 0
      %p123 = por %p121, %p122
      %s124 = ssub.s32 %s20, %s32
      %s125 = ssub.s32 %s21, %s28
      %s126 = sor.u32 %s124, %s125
      %p127 = scmp.eq.s32.totalorder %s126, 0
      %s129 = sadd.s32 %s128, 1
      %s130 = scalar_select %p127, %s128, %s129
      %p133 = pneg %p127
      %p134 = scmp.eq.s32.totalorder %s13, 1
      %p135 = por %p133, %p134
      %p136 = scmp.ne.s32.totalorder %s128, %s131
      %p137 = scmp.eq.s32.totalorder %s13, 0
      %p138 = por %p136, %p137
      %p139 = scmp.ne.s32.totalorder %s128, %s131
      %p140 = scmp.eq.s32.totalorder %s18, 1
      %p141 = por %p139, %p140
      %p142 = scmp.ne.s32.totalorder %s131, %s132
      %p143 = scmp.eq.s32.totalorder %s18, 0
      %p144 = por %p142, %p143
      %p145 = scmp.ne.s32.totalorder %s131, %s132
      %p146 = scmp.eq.s32.totalorder %s19, 1
      %p147 = por %p145, %p146
      %p149 = scmp.ne.s32.totalorder %s132, %s148
      %p150 = scmp.eq.s32.totalorder %s19, 0
      %p151 = por %p149, %p150
      %p152 = scmp.le.s32.totalorder 1, %s13
      %p153 = scmp.lt.s32.totalorder %s13, 3
      %p154 = pnand %p152, %p153
      %p155 = pneg %p154
      // Predicated region
      $region9: #{tpu_custom_call.1} parent=5 // pred_check
        _
      $region10: #{tpu_custom_call.1} parent=5 // pred_check_branch
        %157 = sbr.rel (%p154) target = $region12
      $region11: #{tpu_custom_call.1} parent=5 // pred_region
        %s158 = ssub.s32 %s13, 1
        // Predicated region
        $region13: #{tpu_custom_call.1} parent=11 // pred_check
          %p159 = pneg %p74
        $region14: #{tpu_custom_call.1} parent=11 // pred_check_branch
          %161 = sbr.rel (%p159) target = $region16
        $region15: #{tpu_custom_call.1} parent=11 // pred_region
          _
        $region16: #{tpu_custom_call.1} parent=11 // pred_fallthru
          _
        // Predicated region
        $region17: #{tpu_custom_call.1} parent=11 // pred_check
          %p162 = pneg %p95
        $region18: #{tpu_custom_call.1} parent=11 // pred_check_branch
          %164 = sbr.rel (%p162) target = $region20
        $region19: #{tpu_custom_call.1} parent=11 // pred_region
          _
        $region20: #{tpu_custom_call.1} parent=11 // pred_fallthru
          _
        // Predicated region
        $region21: #{tpu_custom_call.1} parent=11 // pred_check
          %p165 = pneg %p116
        $region22: #{tpu_custom_call.1} parent=11 // pred_check_branch
          %167 = sbr.rel (%p165) target = $region24
        $region23: #{tpu_custom_call.1} parent=11 // pred_region
          _
        $region24: #{tpu_custom_call.1} parent=11 // pred_fallthru
          _
      $region12: #{tpu_custom_call.1} parent=5 // pred_fallthru
        _
      %p168 = scmp.lt.s32.totalorder %s13, 2
      // Predicated region
      $region25: #{tpu_custom_call.1} parent=5 // pred_check
        %p169 = pneg %p168
      $region26: #{tpu_custom_call.1} parent=5 // pred_check_branch
        %171 = sbr.rel (%p169) target = $region28
      $region27: #{tpu_custom_call.1} parent=5 // pred_region
        // Predicated region
        $region29: #{tpu_custom_call.1} parent=27 // pred_check
          %p172 = pneg %p47
        $region30: #{tpu_custom_call.1} parent=27 // pred_check_branch
          %174 = sbr.rel (%p172) target = $region32
        $region31: #{tpu_custom_call.1} parent=27 // pred_region
          %s175 = sadd.s32 %s20, %s21
          %p176 = scmp.lt.s32.totalorder %s175, 1
          %s177 = scalar_select %p176, %s175, 1
          %s178 = smul.addr %s177, 60
          %s179 = smul.addr %s178, 8
          %s180 = scalar_lea.vmem %s0, %s179
          %s181 = sadd.s32 %s20, %s21
        $region32: #{tpu_custom_call.1} parent=27 // pred_fallthru
          _
      $region28: #{tpu_custom_call.1} parent=5 // pred_fallthru
        _
      %p182 = scmp.le.s32.totalorder 1, %s13
      %p183 = scmp.lt.s32.totalorder %s13, 3
      %p184 = pnand %p182, %p183
      %p185 = pneg %p184
      // Predicated region
      $region33: #{tpu_custom_call.1} parent=5 // pred_check
        _
      $region34: #{tpu_custom_call.1} parent=5 // pred_check_branch
        %187 = sbr.rel (%p184) target = $region36
      $region35: #{tpu_custom_call.1} parent=5 // pred_region
        %s188 = ssub.s32 %s13, 1
        %s189 = sadd.s32 %s22, %s23
        %p190 = scmp.lt.s32.totalorder %s189, 1
        %s191 = scalar_select %p190, %s189, 1
        %s192 = smul.addr %s191, 60
        %s193 = smul.addr %s192, 8
        %s194 = scalar_lea.vmem %s0, %s193
        %p195 = pneg %p53
        %p196 = pneg %p50
        %p197 = pneg %p74
        %p198 = pneg %p71
        %p199 = pneg %p95
        %p200 = pneg %p92
        %p201 = pneg %p116
        %p202 = pneg %p113
        %p203 = pneg %p144
        %p204 = pneg %p141
        %s205 = sand.u32 %s131, 1
        %s206 = scalar_lea.sflag [#allocation3], %s205
        %s207 = sand.u32 %s131, 1
        %s208 = smul.addr %s207, 256
        %s209 = scalar_lea.vmem [#allocation2], %s208
        %s210 = sadd.s32 %s22, %s23
        %p211 = scmp.lt.s32.totalorder %s210, 1
        %s212 = scalar_select %p211, %s210, 1
        %s213 = smul.addr %s212, 60
        %s214 = smul.addr %s213, 8
        %s215 = scalar_lea.vmem %s0, %s214
        %s216 = sadd.s32 %s22, %s23
        %s217 = smul.u32 16, %s23
        %v218 = vld [vmem:[%s1] sm:$0x1]
        %v219 = vld [vmem:[%s215] sm:$0xff]
        %v220 = vld [vmem:[%s215 + $0x8] sm:$0xff]
        %v221 = vld [vmem:[%s215 + $0x18] sm:$0xff]
        %v222 = vld [vmem:[%s215 + $0x20] sm:$0xff]
        %v223 = vld [vmem:[%s215 + $0x30] sm:$0xff]
        %v224 = vld [vmem:[%s215 + $0x38] sm:$0xff]
        %v225 = vld [vmem:[%s215 + $0x48] sm:$0xff]
        %v226 = vld [vmem:[%s215 + $0x50] sm:$0xff]
        %v227 = vld [vmem:[%s215 + $0x60] sm:$0xff]
        %v228 = vld [vmem:[%s215 + $0x68] sm:$0xff]
        %v229 = vld [vmem:[%s215 + $0x78] sm:$0xff]
        %v230 = vld [vmem:[%s215 + $0x80] sm:$0xff]
        %v231 = vld [vmem:[%s215 + $0x90] sm:$0xff]
        %v232 = vld [vmem:[%s215 + $0x98] sm:$0xff]
        %v233 = vld [vmem:[%s215 + $0xa8] sm:$0xff]
        %v234 = vld [vmem:[%s215 + $0xb0] sm:$0xff]
        %v235 = vld [vmem:[%s215 + $0xc0] sm:$0xff]
        %v236 = vld [vmem:[%s215 + $0xc8] sm:$0xff]
        %v237 = vld [vmem:[%s215 + $0xd8] sm:$0xff]
        %v238 = vld [vmem:[%s215 + $0xe0] sm:$0xff]
        %v239 = vld [vmem:[%s215 + $0xf0] sm:$0xff]
        %v240 = vld [vmem:[%s215 + $0xf8] sm:$0xff]
        %v241 = vld [vmem:[%s215 + $0x108] sm:$0xff]
        %v242 = vld [vmem:[%s215 + $0x110] sm:$0xff]
        %v243 = vld [vmem:[%s215 + $0x120] sm:$0xff]
        %v244 = vld [vmem:[%s215 + $0x128] sm:$0xff]
        %v245 = vld [vmem:[%s215 + $0x138] sm:$0xff]
        %v246 = vld [vmem:[%s215 + $0x140] sm:$0xff]
        %v247 = vld [vmem:[%s215 + $0x150] sm:$0xff]
        %v248 = vld [vmem:[%s215 + $0x158] sm:$0xff]
        %v249 = vld [vmem:[%s215 + $0x168] sm:$0xff]
        %v250 = vld [vmem:[%s215 + $0x170] sm:$0xff]
        %v251 = vlaneseq
        %v252 = vshrl.u32 %v251, 7
        %v253 = vsub.s32 0, %v252
        %v254 = vrot.slane %v218, %v253
        %v255 = vmul.f32 %v219, %v254
        %v256 = vmul.f32 %v220, %v254
        %v257 = vmul.f32 %v221, %v254
        %v258 = vmul.f32 %v222, %v254
        %v259 = vmul.f32 %v223, %v254
        %v260 = vmul.f32 %v224, %v254
        %v261 = vmul.f32 %v225, %v254
        %v262 = vmul.f32 %v226, %v254
        %v263 = vmul.f32 %v227, %v254
        %v264 = vmul.f32 %v228, %v254
        %v265 = vmul.f32 %v229, %v254
        %v266 = vmul.f32 %v230, %v254
        %v267 = vmul.f32 %v231, %v254
        %v268 = vmul.f32 %v232, %v254
        %v269 = vmul.f32 %v233, %v254
        %v270 = vmul.f32 %v234, %v254
        %v271 = vmul.f32 %v235, %v254
        %v272 = vmul.f32 %v236, %v254
        %v273 = vmul.f32 %v237, %v254
        %v274 = vmul.f32 %v238, %v254
        %v275 = vmul.f32 %v239, %v254
        %v276 = vmul.f32 %v240, %v254
        %v277 = vmul.f32 %v241, %v254
        %v278 = vmul.f32 %v242, %v254
        %v279 = vmul.f32 %v243, %v254
        %v280 = vmul.f32 %v244, %v254
        %v281 = vmul.f32 %v245, %v254
        %v282 = vmul.f32 %v246, %v254
        %v283 = vmul.f32 %v247, %v254
        %v284 = vmul.f32 %v248, %v254
        %v285 = vmul.f32 %v249, %v254
        %v286 = vmul.f32 %v250, %v254
        %v287 = vld [vmem:[%s1 + $0x1] sm:$0x1]
        %v288 = vld [vmem:[%s215 + $0x2] sm:$0xff]
        %v289 = vld [vmem:[%s215 + $0xa] sm:$0xff]
        %v290 = vld [vmem:[%s215 + $0x1a] sm:$0xff]
        %v291 = vld [vmem:[%s215 + $0x22] sm:$0xff]
        %v292 = vld [vmem:[%s215 + $0x32] sm:$0xff]
        %v293 = vld [vmem:[%s215 + $0x3a] sm:$0xff]
        %v294 = vld [vmem:[%s215 + $0x4a] sm:$0xff]
        %v295 = vld [vmem:[%s215 + $0x52] sm:$0xff]
        %v296 = vld [vmem:[%s215 + $0x62] sm:$0xff]
        %v297 = vld [vmem:[%s215 + $0x6a] sm:$0xff]
        %v298 = vld [vmem:[%s215 + $0x7a] sm:$0xff]
        %v299 = vld [vmem:[%s215 + $0x82] sm:$0xff]
        %v300 = vld [vmem:[%s215 + $0x92] sm:$0xff]
        %v301 = vld [vmem:[%s215 + $0x9a] sm:$0xff]
        %v302 = vld [vmem:[%s215 + $0xaa] sm:$0xff]
        %v303 = vld [vmem:[%s215 + $0xb2] sm:$0xff]
        %v304 = vld [vmem:[%s215 + $0xc2] sm:$0xff]
        %v305 = vld [vmem:[%s215 + $0xca] sm:$0xff]
        %v306 = vld [vmem:[%s215 + $0xda] sm:$0xff]
        %v307 = vld [vmem:[%s215 + $0xe2] sm:$0xff]
        %v308 = vld [vmem:[%s215 + $0xf2] sm:$0xff]
        %v309 = vld [vmem:[%s215 + $0xfa] sm:$0xff]
        %v310 = vld [vmem:[%s215 + $0x10a] sm:$0xff]
        %v311 = vld [vmem:[%s215 + $0x112] sm:$0xff]
        %v312 = vld [vmem:[%s215 + $0x122] sm:$0xff]
        %v313 = vld [vmem:[%s215 + $0x12a] sm:$0xff]
        %v314 = vld [vmem:[%s215 + $0x13a] sm:$0xff]
        %v315 = vld [vmem:[%s215 + $0x142] sm:$0xff]
        %v316 = vld [vmem:[%s215 + $0x152] sm:$0xff]
        %v317 = vld [vmem:[%s215 + $0x15a] sm:$0xff]
        %v318 = vld [vmem:[%s215 + $0x16a] sm:$0xff]
        %v319 = vld [vmem:[%s215 + $0x172] sm:$0xff]
        %v320 = vlaneseq
        %v321 = vshrl.u32 %v320, 7
        %v322 = vsub.s32 0, %v321
        %v323 = vrot.slane %v287, %v322
        %v324 = vmul.f32 %v288, %v323
        %v325 = vmul.f32 %v289, %v323
        %v326 = vmul.f32 %v290, %v323
        %v327 = vmul.f32 %v291, %v323
        %v328 = vmul.f32 %v292, %v323
        %v329 = vmul.f32 %v293, %v323
        %v330 = vmul.f32 %v294, %v323
        %v331 = vmul.f32 %v295, %v323
        %v332 = vmul.f32 %v296, %v323
        %v333 = vmul.f32 %v297, %v323
        %v334 = vmul.f32 %v298, %v323
        %v335 = vmul.f32 %v299, %v323
        %v336 = vmul.f32 %v300, %v323
        %v337 = vmul.f32 %v301, %v323
        %v338 = vmul.f32 %v302, %v323
        %v339 = vmul.f32 %v303, %v323
        %v340 = vmul.f32 %v304, %v323
        %v341 = vmul.f32 %v305, %v323
        %v342 = vmul.f32 %v306, %v323
        %v343 = vmul.f32 %v307, %v323
        %v344 = vmul.f32 %v308, %v323
        %v345 = vmul.f32 %v309, %v323
        %v346 = vmul.f32 %v310, %v323
        %v347 = vmul.f32 %v311, %v323
        %v348 = vmul.f32 %v312, %v323
        %v349 = vmul.f32 %v313, %v323
        %v350 = vmul.f32 %v314, %v323
        %v351 = vmul.f32 %v315, %v323
        %v352 = vmul.f32 %v316, %v323
        %v353 = vmul.f32 %v317, %v323
        %v354 = vmul.f32 %v318, %v323
        %v355 = vmul.f32 %v319, %v323
        %v356 = vadd.f32 %v255, %v324
        %v357 = vadd.f32 %v256, %v325
        %v358 = vadd.f32 %v257, %v326
        %v359 = vadd.f32 %v258, %v327
        %v360 = vadd.f32 %v259, %v328
        %v361 = vadd.f32 %v260, %v329
        %v362 = vadd.f32 %v261, %v330
        %v363 = vadd.f32 %v262, %v331
        %v364 = vadd.f32 %v263, %v332
        %v365 = vadd.f32 %v264, %v333
        %v366 = vadd.f32 %v265, %v334
        %v367 = vadd.f32 %v266, %v335
        %v368 = vadd.f32 %v267, %v336
        %v369 = vadd.f32 %v268, %v337
        %v370 = vadd.f32 %v269, %v338
        %v371 = vadd.f32 %v270, %v339
        %v372 = vadd.f32 %v271, %v340
        %v373 = vadd.f32 %v272, %v341
        %v374 = vadd.f32 %v273, %v342
        %v375 = vadd.f32 %v274, %v343
        %v376 = vadd.f32 %v275, %v344
        %v377 = vadd.f32 %v276, %v345
        %v378 = vadd.f32 %v277, %v346
        %v379 = vadd.f32 %v278, %v347
        %v380 = vadd.f32 %v279, %v348
        %v381 = vadd.f32 %v280, %v349
        %v382 = vadd.f32 %v281, %v350
        %v383 = vadd.f32 %v282, %v351
        %v384 = vadd.f32 %v283, %v352
        %v385 = vadd.f32 %v284, %v353
        %v386 = vadd.f32 %v285, %v354
        %v387 = vadd.f32 %v286, %v355
        %v388 = vld [vmem:[%s1 + $0x2] sm:$0x1]
        %v389 = vld [vmem:[%s215 + $0x4] sm:$0xff]
        %v390 = vld [vmem:[%s215 + $0xc] sm:$0xff]
        %v391 = vld [vmem:[%s215 + $0x1c] sm:$0xff]
        %v392 = vld [vmem:[%s215 + $0x24] sm:$0xff]
        %v393 = vld [vmem:[%s215 + $0x34] sm:$0xff]
        %v394 = vld [vmem:[%s215 + $0x3c] sm:$0xff]
        %v395 = vld [vmem:[%s215 + $0x4c] sm:$0xff]
        %v396 = vld [vmem:[%s215 + $0x54] sm:$0xff]
        %v397 = vld [vmem:[%s215 + $0x64] sm:$0xff]
        %v398 = vld [vmem:[%s215 + $0x6c] sm:$0xff]
        %v399 = vld [vmem:[%s215 + $0x7c] sm:$0xff]
        %v400 = vld [vmem:[%s215 + $0x84] sm:$0xff]
        %v401 = vld [vmem:[%s215 + $0x94] sm:$0xff]
        %v402 = vld [vmem:[%s215 + $0x9c] sm:$0xff]
        %v403 = vld [vmem:[%s215 + $0xac] sm:$0xff]
        %v404 = vld [vmem:[%s215 + $0xb4] sm:$0xff]
        %v405 = vld [vmem:[%s215 + $0xc4] sm:$0xff]
        %v406 = vld [vmem:[%s215 + $0xcc] sm:$0xff]
        %v407 = vld [vmem:[%s215 + $0xdc] sm:$0xff]
        %v408 = vld [vmem:[%s215 + $0xe4] sm:$0xff]
        %v409 = vld [vmem:[%s215 + $0xf4] sm:$0xff]
        %v410 = vld [vmem:[%s215 + $0xfc] sm:$0xff]
        %v411 = vld [vmem:[%s215 + $0x10c] sm:$0xff]
        %v412 = vld [vmem:[%s215 + $0x114] sm:$0xff]
        %v413 = vld [vmem:[%s215 + $0x124] sm:$0xff]
        %v414 = vld [vmem:[%s215 + $0x12c] sm:$0xff]
        %v415 = vld [vmem:[%s215 + $0x13c] sm:$0xff]
        %v416 = vld [vmem:[%s215 + $0x144] sm:$0xff]
        %v417 = vld [vmem:[%s215 + $0x154] sm:$0xff]
        %v418 = vld [vmem:[%s215 + $0x15c] sm:$0xff]
        %v419 = vld [vmem:[%s215 + $0x16c] sm:$0xff]
        %v420 = vld [vmem:[%s215 + $0x174] sm:$0xff]
        %v421 = vlaneseq
        %v422 = vshrl.u32 %v421, 7
        %v423 = vsub.s32 0, %v422
        %v424 = vrot.slane %v388, %v423
        %v425 = vmul.f32 %v389, %v424
        %v426 = vmul.f32 %v390, %v424
        %v427 = vmul.f32 %v391, %v424
        %v428 = vmul.f32 %v392, %v424
        %v429 = vmul.f32 %v393, %v424
        %v430 = vmul.f32 %v394, %v424
        %v431 = vmul.f32 %v395, %v424
        %v432 = vmul.f32 %v396, %v424
        %v433 = vmul.f32 %v397, %v424
        %v434 = vmul.f32 %v398, %v424
        %v435 = vmul.f32 %v399, %v424
        %v436 = vmul.f32 %v400, %v424
        %v437 = vmul.f32 %v401, %v424
        %v438 = vmul.f32 %v402, %v424
        %v439 = vmul.f32 %v403, %v424
        %v440 = vmul.f32 %v404, %v424
        %v441 = vmul.f32 %v405, %v424
        %v442 = vmul.f32 %v406, %v424
        %v443 = vmul.f32 %v407, %v424
        %v444 = vmul.f32 %v408, %v424
        %v445 = vmul.f32 %v409, %v424
        %v446 = vmul.f32 %v410, %v424
        %v447 = vmul.f32 %v411, %v424
        %v448 = vmul.f32 %v412, %v424
        %v449 = vmul.f32 %v413, %v424
        %v450 = vmul.f32 %v414, %v424
        %v451 = vmul.f32 %v415, %v424
        %v452 = vmul.f32 %v416, %v424
        %v453 = vmul.f32 %v417, %v424
        %v454 = vmul.f32 %v418, %v424
        %v455 = vmul.f32 %v419, %v424
        %v456 = vmul.f32 %v420, %v424
        %v457 = vadd.f32 %v356, %v425
        %v458 = vadd.f32 %v357, %v426
        %v459 = vadd.f32 %v358, %v427
        %v460 = vadd.f32 %v359, %v428
        %v461 = vadd.f32 %v360, %v429
        %v462 = vadd.f32 %v361, %v430
        %v463 = vadd.f32 %v362, %v431
        %v464 = vadd.f32 %v363, %v432
        %v465 = vadd.f32 %v364, %v433
        %v466 = vadd.f32 %v365, %v434
        %v467 = vadd.f32 %v366, %v435
        %v468 = vadd.f32 %v367, %v436
        %v469 = vadd.f32 %v368, %v437
        %v470 = vadd.f32 %v369, %v438
        %v471 = vadd.f32 %v370, %v439
        %v472 = vadd.f32 %v371, %v440
        %v473 = vadd.f32 %v372, %v441
        %v474 = vadd.f32 %v373, %v442
        %v475 = vadd.f32 %v374, %v443
        %v476 = vadd.f32 %v375, %v444
        %v477 = vadd.f32 %v376, %v445
        %v478 = vadd.f32 %v377, %v446
        %v479 = vadd.f32 %v378, %v447
        %v480 = vadd.f32 %v379, %v448
        %v481 = vadd.f32 %v380, %v449
        %v482 = vadd.f32 %v381, %v450
        %v483 = vadd.f32 %v382, %v451
        %v484 = vadd.f32 %v383, %v452
        %v485 = vadd.f32 %v384, %v453
        %v486 = vadd.f32 %v385, %v454
        %v487 = vadd.f32 %v386, %v455
        %v488 = vadd.f32 %v387, %v456
        %v489 = vld [vmem:[%s1 + $0x3] sm:$0x1]
        %s490 = scalar_lea.vmem %s215, 48
        %v491 = vld [vmem:[%s490] sm:$0xff]
        %v492 = vld [vmem:[%s490 + $0x8] sm:$0xff]
        %v493 = vld [vmem:[%s490 + $0x18] sm:$0xff]
        %v494 = vld [vmem:[%s490 + $0x20] sm:$0xff]
        %v495 = vld [vmem:[%s490 + $0x30] sm:$0xff]
        %v496 = vld [vmem:[%s490 + $0x38] sm:$0xff]
        %v497 = vld [vmem:[%s490 + $0x48] sm:$0xff]
        %v498 = vld [vmem:[%s490 + $0x50] sm:$0xff]
        %v499 = vld [vmem:[%s490 + $0x60] sm:$0xff]
        %v500 = vld [vmem:[%s490 + $0x68] sm:$0xff]
        %v501 = vld [vmem:[%s490 + $0x78] sm:$0xff]
        %v502 = vld [vmem:[%s490 + $0x80] sm:$0xff]
        %v503 = vld [vmem:[%s490 + $0x90] sm:$0xff]
        %v504 = vld [vmem:[%s490 + $0x98] sm:$0xff]
        %v505 = vld [vmem:[%s490 + $0xa8] sm:$0xff]
        %v506 = vld [vmem:[%s490 + $0xb0] sm:$0xff]
        %v507 = vld [vmem:[%s490 + $0xc0] sm:$0xff]
        %v508 = vld [vmem:[%s490 + $0xc8] sm:$0xff]
        %v509 = vld [vmem:[%s490 + $0xd8] sm:$0xff]
        %v510 = vld [vmem:[%s490 + $0xe0] sm:$0xff]
        %v511 = vld [vmem:[%s490 + $0xf0] sm:$0xff]
        %v512 = vld [vmem:[%s490 + $0xf8] sm:$0xff]
        %v513 = vld [vmem:[%s490 + $0x108] sm:$0xff]
        %v514 = vld [vmem:[%s490 + $0x110] sm:$0xff]
        %v515 = vld [vmem:[%s490 + $0x120] sm:$0xff]
        %v516 = vld [vmem:[%s490 + $0x128] sm:$0xff]
        %v517 = vld [vmem:[%s490 + $0x138] sm:$0xff]
        %v518 = vld [vmem:[%s490 + $0x140] sm:$0xff]
        %v519 = vld [vmem:[%s490 + $0x150] sm:$0xff]
        %v520 = vld [vmem:[%s490 + $0x158] sm:$0xff]
        %v521 = vld [vmem:[%s490 + $0x168] sm:$0xff]
        %v522 = vld [vmem:[%s490 + $0x170] sm:$0xff]
        %v523 = vlaneseq
        %v524 = vshrl.u32 %v523, 7
        %v525 = vsub.s32 0, %v524
        %v526 = vrot.slane %v489, %v525
        %v527 = vmul.f32 %v491, %v526
        %v528 = vmul.f32 %v492, %v526
        %v529 = vmul.f32 %v493, %v526
        %v530 = vmul.f32 %v494, %v526
        %v531 = vmul.f32 %v495, %v526
        %v532 = vmul.f32 %v496, %v526
        %v533 = vmul.f32 %v497, %v526
        %v534 = vmul.f32 %v498, %v526
        %v535 = vmul.f32 %v499, %v526
        %v536 = vmul.f32 %v500, %v526
        %v537 = vmul.f32 %v501, %v526
        %v538 = vmul.f32 %v502, %v526
        %v539 = vmul.f32 %v503, %v526
        %v540 = vmul.f32 %v504, %v526
        %v541 = vmul.f32 %v505, %v526
        %v542 = vmul.f32 %v506, %v526
        %v543 = vmul.f32 %v507, %v526
        %v544 = vmul.f32 %v508, %v526
        %v545 = vmul.f32 %v509, %v526
        %v546 = vmul.f32 %v510, %v526
        %v547 = vmul.f32 %v511, %v526
        %v548 = vmul.f32 %v512, %v526
        %v549 = vmul.f32 %v513, %v526
        %v550 = vmul.f32 %v514, %v526
        %v551 = vmul.f32 %v515, %v526
        %v552 = vmul.f32 %v516, %v526
        %v553 = vmul.f32 %v517, %v526
        %v554 = vmul.f32 %v518, %v526
        %v555 = vmul.f32 %v519, %v526
        %v556 = vmul.f32 %v520, %v526
        %v557 = vmul.f32 %v521, %v526
        %v558 = vmul.f32 %v522, %v526
        %v559 = vadd.f32 %v457, %v527
        %v560 = vadd.f32 %v458, %v528
        %v561 = vadd.f32 %v459, %v529
        %v562 = vadd.f32 %v460, %v530
        %v563 = vadd.f32 %v461, %v531
        %v564 = vadd.f32 %v462, %v532
        %v565 = vadd.f32 %v463, %v533
        %v566 = vadd.f32 %v464, %v534
        %v567 = vadd.f32 %v465, %v535
        %v568 = vadd.f32 %v466, %v536
        %v569 = vadd.f32 %v467, %v537
        %v570 = vadd.f32 %v468, %v538
        %v571 = vadd.f32 %v469, %v539
        %v572 = vadd.f32 %v470, %v540
        %v573 = vadd.f32 %v471, %v541
        %v574 = vadd.f32 %v472, %v542
        %v575 = vadd.f32 %v473, %v543
        %v576 = vadd.f32 %v474, %v544
        %v577 = vadd.f32 %v475, %v545
        %v578 = vadd.f32 %v476, %v546
        %v579 = vadd.f32 %v477, %v547
        %v580 = vadd.f32 %v478, %v548
        %v581 = vadd.f32 %v479, %v549
        %v582 = vadd.f32 %v480, %v550
        %v583 = vadd.f32 %v481, %v551
        %v584 = vadd.f32 %v482, %v552
        %v585 = vadd.f32 %v483, %v553
        %v586 = vadd.f32 %v484, %v554
        %v587 = vadd.f32 %v485, %v555
        %v588 = vadd.f32 %v486, %v556
        %v589 = vadd.f32 %v487, %v557
        %v590 = vadd.f32 %v488, %v558
        %v591 = vld [vmem:[%s1 + $0x4] sm:$0x1]
        %v592 = vld [vmem:[%s490 + $0x2] sm:$0xff]
        %v593 = vld [vmem:[%s490 + $0xa] sm:$0xff]
        %v594 = vld [vmem:[%s490 + $0x1a] sm:$0xff]
        %v595 = vld [vmem:[%s490 + $0x22] sm:$0xff]
        %v596 = vld [vmem:[%s490 + $0x32] sm:$0xff]
        %v597 = vld [vmem:[%s490 + $0x3a] sm:$0xff]
        %v598 = vld [vmem:[%s490 + $0x4a] sm:$0xff]
        %v599 = vld [vmem:[%s490 + $0x52] sm:$0xff]
        %v600 = vld [vmem:[%s490 + $0x62] sm:$0xff]
        %v601 = vld [vmem:[%s490 + $0x6a] sm:$0xff]
        %v602 = vld [vmem:[%s490 + $0x7a] sm:$0xff]
        %v603 = vld [vmem:[%s490 + $0x82] sm:$0xff]
        %v604 = vld [vmem:[%s490 + $0x92] sm:$0xff]
        %v605 = vld [vmem:[%s490 + $0x9a] sm:$0xff]
        %v606 = vld [vmem:[%s490 + $0xaa] sm:$0xff]
        %v607 = vld [vmem:[%s490 + $0xb2] sm:$0xff]
        %v608 = vld [vmem:[%s490 + $0xc2] sm:$0xff]
        %v609 = vld [vmem:[%s490 + $0xca] sm:$0xff]
        %v610 = vld [vmem:[%s490 + $0xda] sm:$0xff]
        %v611 = vld [vmem:[%s490 + $0xe2] sm:$0xff]
        %v612 = vld [vmem:[%s490 + $0xf2] sm:$0xff]
        %v613 = vld [vmem:[%s490 + $0xfa] sm:$0xff]
        %v614 = vld [vmem:[%s490 + $0x10a] sm:$0xff]
        %v615 = vld [vmem:[%s490 + $0x112] sm:$0xff]
        %v616 = vld [vmem:[%s490 + $0x122] sm:$0xff]
        %v617 = vld [vmem:[%s490 + $0x12a] sm:$0xff]
        %v618 = vld [vmem:[%s490 + $0x13a] sm:$0xff]
        %v619 = vld [vmem:[%s490 + $0x142] sm:$0xff]
        %v620 = vld [vmem:[%s490 + $0x152] sm:$0xff]
        %v621 = vld [vmem:[%s490 + $0x15a] sm:$0xff]
        %v622 = vld [vmem:[%s490 + $0x16a] sm:$0xff]
        %v623 = vld [vmem:[%s490 + $0x172] sm:$0xff]
        %v624 = vlaneseq
        %v625 = vshrl.u32 %v624, 7
        %v626 = vsub.s32 0, %v625
        %v627 = vrot.slane %v591, %v626
        %v628 = vmul.f32 %v592, %v627
        %v629 = vmul.f32 %v593, %v627
        %v630 = vmul.f32 %v594, %v627
        %v631 = vmul.f32 %v595, %v627
        %v632 = vmul.f32 %v596, %v627
        %v633 = vmul.f32 %v597, %v627
        %v634 = vmul.f32 %v598, %v627
        %v635 = vmul.f32 %v599, %v627
        %v636 = vmul.f32 %v600, %v627
        %v637 = vmul.f32 %v601, %v627
        %v638 = vmul.f32 %v602, %v627
        %v639 = vmul.f32 %v603, %v627
        %v640 = vmul.f32 %v604, %v627
        %v641 = vmul.f32 %v605, %v627
        %v642 = vmul.f32 %v606, %v627
        %v643 = vmul.f32 %v607, %v627
        %v644 = vmul.f32 %v608, %v627
        %v645 = vmul.f32 %v609, %v627
        %v646 = vmul.f32 %v610, %v627
        %v647 = vmul.f32 %v611, %v627
        %v648 = vmul.f32 %v612, %v627
        %v649 = vmul.f32 %v613, %v627
        %v650 = vmul.f32 %v614, %v627
        %v651 = vmul.f32 %v615, %v627
        %v652 = vmul.f32 %v616, %v627
        %v653 = vmul.f32 %v617, %v627
        %v654 = vmul.f32 %v618, %v627
        %v655 = vmul.f32 %v619, %v627
        %v656 = vmul.f32 %v620, %v627
        %v657 = vmul.f32 %v621, %v627
        %v658 = vmul.f32 %v622, %v627
        %v659 = vmul.f32 %v623, %v627
        %v660 = vadd.f32 %v559, %v628
        %v661 = vadd.f32 %v560, %v629
        %v662 = vadd.f32 %v561, %v630
        %v663 = vadd.f32 %v562, %v631
        %v664 = vadd.f32 %v563, %v632
        %v665 = vadd.f32 %v564, %v633
        %v666 = vadd.f32 %v565, %v634
        %v667 = vadd.f32 %v566, %v635
        %v668 = vadd.f32 %v567, %v636
        %v669 = vadd.f32 %v568, %v637
        %v670 = vadd.f32 %v569, %v638
        %v671 = vadd.f32 %v570, %v639
        %v672 = vadd.f32 %v571, %v640
        %v673 = vadd.f32 %v572, %v641
        %v674 = vadd.f32 %v573, %v642
        %v675 = vadd.f32 %v574, %v643
        %v676 = vadd.f32 %v575, %v644
        %v677 = vadd.f32 %v576, %v645
        %v678 = vadd.f32 %v577, %v646
        %v679 = vadd.f32 %v578, %v647
        %v680 = vadd.f32 %v579, %v648
        %v681 = vadd.f32 %v580, %v649
        %v682 = vadd.f32 %v581, %v650
        %v683 = vadd.f32 %v582, %v651
        %v684 = vadd.f32 %v583, %v652
        %v685 = vadd.f32 %v584, %v653
        %v686 = vadd.f32 %v585, %v654
        %v687 = vadd.f32 %v586, %v655
        %v688 = vadd.f32 %v587, %v656
        %v689 = vadd.f32 %v588, %v657
        %v690 = vadd.f32 %v589, %v658
        %v691 = vadd.f32 %v590, %v659
        %v692 = vld [vmem:[%s1 + $0x5] sm:$0x1]
        %v693 = vld [vmem:[%s490 + $0x4] sm:$0xff]
        %v694 = vld [vmem:[%s490 + $0xc] sm:$0xff]
        %v695 = vld [vmem:[%s490 + $0x1c] sm:$0xff]
        %v696 = vld [vmem:[%s490 + $0x24] sm:$0xff]
        %v697 = vld [vmem:[%s490 + $0x34] sm:$0xff]
        %v698 = vld [vmem:[%s490 + $0x3c] sm:$0xff]
        %v699 = vld [vmem:[%s490 + $0x4c] sm:$0xff]
        %v700 = vld [vmem:[%s490 + $0x54] sm:$0xff]
        %v701 = vld [vmem:[%s490 + $0x64] sm:$0xff]
        %v702 = vld [vmem:[%s490 + $0x6c] sm:$0xff]
        %v703 = vld [vmem:[%s490 + $0x7c] sm:$0xff]
        %v704 = vld [vmem:[%s490 + $0x84] sm:$0xff]
        %v705 = vld [vmem:[%s490 + $0x94] sm:$0xff]
        %v706 = vld [vmem:[%s490 + $0x9c] sm:$0xff]
        %v707 = vld [vmem:[%s490 + $0xac] sm:$0xff]
        %v708 = vld [vmem:[%s490 + $0xb4] sm:$0xff]
        %v709 = vld [vmem:[%s490 + $0xc4] sm:$0xff]
        %v710 = vld [vmem:[%s490 + $0xcc] sm:$0xff]
        %v711 = vld [vmem:[%s490 + $0xdc] sm:$0xff]
        %v712 = vld [vmem:[%s490 + $0xe4] sm:$0xff]
        %v713 = vld [vmem:[%s490 + $0xf4] sm:$0xff]
        %v714 = vld [vmem:[%s490 + $0xfc] sm:$0xff]
        %v715 = vld [vmem:[%s490 + $0x10c] sm:$0xff]
        %v716 = vld [vmem:[%s490 + $0x114] sm:$0xff]
        %v717 = vld [vmem:[%s490 + $0x124] sm:$0xff]
        %v718 = vld [vmem:[%s490 + $0x12c] sm:$0xff]
        %v719 = vld [vmem:[%s490 + $0x13c] sm:$0xff]
        %v720 = vld [vmem:[%s490 + $0x144] sm:$0xff]
        %v721 = vld [vmem:[%s490 + $0x154] sm:$0xff]
        %v722 = vld [vmem:[%s490 + $0x15c] sm:$0xff]
        %v723 = vld [vmem:[%s490 + $0x16c] sm:$0xff]
        %v724 = vld [vmem:[%s490 + $0x174] sm:$0xff]
        %v725 = vlaneseq
        %v726 = vshrl.u32 %v725, 7
        %v727 = vsub.s32 0, %v726
        %v728 = vrot.slane %v692, %v727
        %v729 = vmul.f32 %v693, %v728
        %v730 = vmul.f32 %v694, %v728
        %v731 = vmul.f32 %v695, %v728
        %v732 = vmul.f32 %v696, %v728
        %v733 = vmul.f32 %v697, %v728
        %v734 = vmul.f32 %v698, %v728
        %v735 = vmul.f32 %v699, %v728
        %v736 = vmul.f32 %v700, %v728
        %v737 = vmul.f32 %v701, %v728
        %v738 = vmul.f32 %v702, %v728
        %v739 = vmul.f32 %v703, %v728
        %v740 = vmul.f32 %v704, %v728
        %v741 = vmul.f32 %v705, %v728
        %v742 = vmul.f32 %v706, %v728
        %v743 = vmul.f32 %v707, %v728
        %v744 = vmul.f32 %v708, %v728
        %v745 = vmul.f32 %v709, %v728
        %v746 = vmul.f32 %v710, %v728
        %v747 = vmul.f32 %v711, %v728
        %v748 = vmul.f32 %v712, %v728
        %v749 = vmul.f32 %v713, %v728
        %v750 = vmul.f32 %v714, %v728
        %v751 = vmul.f32 %v715, %v728
        %v752 = vmul.f32 %v716, %v728
        %v753 = vmul.f32 %v717, %v728
        %v754 = vmul.f32 %v718, %v728
        %v755 = vmul.f32 %v719, %v728
        %v756 = vmul.f32 %v720, %v728
        %v757 = vmul.f32 %v721, %v728
        %v758 = vmul.f32 %v722, %v728
        %v759 = vmul.f32 %v723, %v728
        %v760 = vmul.f32 %v724, %v728
        %v761 = vadd.f32 %v660, %v729
        %v762 = vadd.f32 %v661, %v730
        %v763 = vadd.f32 %v662, %v731
        %v764 = vadd.f32 %v663, %v732
        %v765 = vadd.f32 %v664, %v733
        %v766 = vadd.f32 %v665, %v734
        %v767 = vadd.f32 %v666, %v735
        %v768 = vadd.f32 %v667, %v736
        %v769 = vadd.f32 %v668, %v737
        %v770 = vadd.f32 %v669, %v738
        %v771 = vadd.f32 %v670, %v739
        %v772 = vadd.f32 %v671, %v740
        %v773 = vadd.f32 %v672, %v741
        %v774 = vadd.f32 %v673, %v742
        %v775 = vadd.f32 %v674, %v743
        %v776 = vadd.f32 %v675, %v744
        %v777 = vadd.f32 %v676, %v745
        %v778 = vadd.f32 %v677, %v746
        %v779 = vadd.f32 %v678, %v747
        %v780 = vadd.f32 %v679, %v748
        %v781 = vadd.f32 %v680, %v749
        %v782 = vadd.f32 %v681, %v750
        %v783 = vadd.f32 %v682, %v751
        %v784 = vadd.f32 %v683, %v752
        %v785 = vadd.f32 %v684, %v753
        %v786 = vadd.f32 %v685, %v754
        %v787 = vadd.f32 %v686, %v755
        %v788 = vadd.f32 %v687, %v756
        %v789 = vadd.f32 %v688, %v757
        %v790 = vadd.f32 %v689, %v758
        %v791 = vadd.f32 %v690, %v759
        %v792 = vadd.f32 %v691, %v760
        %v793 = vld [vmem:[%s1 + $0x6] sm:$0x1]
        %s794 = scalar_lea.vmem %s215, 96
        %v795 = vld [vmem:[%s794] sm:$0xff]
        %v796 = vld [vmem:[%s794 + $0x8] sm:$0xff]
        %v797 = vld [vmem:[%s794 + $0x18] sm:$0xff]
        %v798 = vld [vmem:[%s794 + $0x20] sm:$0xff]
        %v799 = vld [vmem:[%s794 + $0x30] sm:$0xff]
        %v800 = vld [vmem:[%s794 + $0x38] sm:$0xff]
        %v801 = vld [vmem:[%s794 + $0x48] sm:$0xff]
        %v802 = vld [vmem:[%s794 + $0x50] sm:$0xff]
        %v803 = vld [vmem:[%s794 + $0x60] sm:$0xff]
        %v804 = vld [vmem:[%s794 + $0x68] sm:$0xff]
        %v805 = vld [vmem:[%s794 + $0x78] sm:$0xff]
        %v806 = vld [vmem:[%s794 + $0x80] sm:$0xff]
        %v807 = vld [vmem:[%s794 + $0x90] sm:$0xff]
        %v808 = vld [vmem:[%s794 + $0x98] sm:$0xff]
        %v809 = vld [vmem:[%s794 + $0xa8] sm:$0xff]
        %v810 = vld [vmem:[%s794 + $0xb0] sm:$0xff]
        %v811 = vld [vmem:[%s794 + $0xc0] sm:$0xff]
        %v812 = vld [vmem:[%s794 + $0xc8] sm:$0xff]
        %v813 = vld [vmem:[%s794 + $0xd8] sm:$0xff]
        %v814 = vld [vmem:[%s794 + $0xe0] sm:$0xff]
        %v815 = vld [vmem:[%s794 + $0xf0] sm:$0xff]
        %v816 = vld [vmem:[%s794 + $0xf8] sm:$0xff]
        %v817 = vld [vmem:[%s794 + $0x108] sm:$0xff]
        %v818 = vld [vmem:[%s794 + $0x110] sm:$0xff]
        %v819 = vld [vmem:[%s794 + $0x120] sm:$0xff]
        %v820 = vld [vmem:[%s794 + $0x128] sm:$0xff]
        %v821 = vld [vmem:[%s794 + $0x138] sm:$0xff]
        %v822 = vld [vmem:[%s794 + $0x140] sm:$0xff]
        %v823 = vld [vmem:[%s794 + $0x150] sm:$0xff]
        %v824 = vld [vmem:[%s794 + $0x158] sm:$0xff]
        %v825 = vld [vmem:[%s794 + $0x168] sm:$0xff]
        %v826 = vld [vmem:[%s794 + $0x170] sm:$0xff]
        %v827 = vlaneseq
        %v828 = vshrl.u32 %v827, 7
        %v829 = vsub.s32 0, %v828
        %v830 = vrot.slane %v793, %v829
        %v831 = vmul.f32 %v795, %v830
        %v832 = vmul.f32 %v796, %v830
        %v833 = vmul.f32 %v797, %v830
        %v834 = vmul.f32 %v798, %v830
        %v835 = vmul.f32 %v799, %v830
        %v836 = vmul.f32 %v800, %v830
        %v837 = vmul.f32 %v801, %v830
        %v838 = vmul.f32 %v802, %v830
        %v839 = vmul.f32 %v803, %v830
        %v840 = vmul.f32 %v804, %v830
        %v841 = vmul.f32 %v805, %v830
        %v842 = vmul.f32 %v806, %v830
        %v843 = vmul.f32 %v807, %v830
        %v844 = vmul.f32 %v808, %v830
        %v845 = vmul.f32 %v809, %v830
        %v846 = vmul.f32 %v810, %v830
        %v847 = vmul.f32 %v811, %v830
        %v848 = vmul.f32 %v812, %v830
        %v849 = vmul.f32 %v813, %v830
        %v850 = vmul.f32 %v814, %v830
        %v851 = vmul.f32 %v815, %v830
        %v852 = vmul.f32 %v816, %v830
        %v853 = vmul.f32 %v817, %v830
        %v854 = vmul.f32 %v818, %v830
        %v855 = vmul.f32 %v819, %v830
        %v856 = vmul.f32 %v820, %v830
        %v857 = vmul.f32 %v821, %v830
        %v858 = vmul.f32 %v822, %v830
        %v859 = vmul.f32 %v823, %v830
        %v860 = vmul.f32 %v824, %v830
        %v861 = vmul.f32 %v825, %v830
        %v862 = vmul.f32 %v826, %v830
        %v863 = vadd.f32 %v761, %v831
        %v864 = vadd.f32 %v762, %v832
        %v865 = vadd.f32 %v763, %v833
        %v866 = vadd.f32 %v764, %v834
        %v867 = vadd.f32 %v765, %v835
        %v868 = vadd.f32 %v766, %v836
        %v869 = vadd.f32 %v767, %v837
        %v870 = vadd.f32 %v768, %v838
        %v871 = vadd.f32 %v769, %v839
        %v872 = vadd.f32 %v770, %v840
        %v873 = vadd.f32 %v771, %v841
        %v874 = vadd.f32 %v772, %v842
        %v875 = vadd.f32 %v773, %v843
        %v876 = vadd.f32 %v774, %v844
        %v877 = vadd.f32 %v775, %v845
        %v878 = vadd.f32 %v776, %v846
        %v879 = vadd.f32 %v777, %v847
        %v880 = vadd.f32 %v778, %v848
        %v881 = vadd.f32 %v779, %v849
        %v882 = vadd.f32 %v780, %v850
        %v883 = vadd.f32 %v781, %v851
        %v884 = vadd.f32 %v782, %v852
        %v885 = vadd.f32 %v783, %v853
        %v886 = vadd.f32 %v784, %v854
        %v887 = vadd.f32 %v785, %v855
        %v888 = vadd.f32 %v786, %v856
        %v889 = vadd.f32 %v787, %v857
        %v890 = vadd.f32 %v788, %v858
        %v891 = vadd.f32 %v789, %v859
        %v892 = vadd.f32 %v790, %v860
        %v893 = vadd.f32 %v791, %v861
        %v894 = vadd.f32 %v792, %v862
        %v895 = vld [vmem:[%s1 + $0x7] sm:$0x1]
        %v896 = vld [vmem:[%s794 + $0x2] sm:$0xff]
        %v897 = vld [vmem:[%s794 + $0xa] sm:$0xff]
        %v898 = vld [vmem:[%s794 + $0x1a] sm:$0xff]
        %v899 = vld [vmem:[%s794 + $0x22] sm:$0xff]
        %v900 = vld [vmem:[%s794 + $0x32] sm:$0xff]
        %v901 = vld [vmem:[%s794 + $0x3a] sm:$0xff]
        %v902 = vld [vmem:[%s794 + $0x4a] sm:$0xff]
        %v903 = vld [vmem:[%s794 + $0x52] sm:$0xff]
        %v904 = vld [vmem:[%s794 + $0x62] sm:$0xff]
        %v905 = vld [vmem:[%s794 + $0x6a] sm:$0xff]
        %v906 = vld [vmem:[%s794 + $0x7a] sm:$0xff]
        %v907 = vld [vmem:[%s794 + $0x82] sm:$0xff]
        %v908 = vld [vmem:[%s794 + $0x92] sm:$0xff]
        %v909 = vld [vmem:[%s794 + $0x9a] sm:$0xff]
        %v910 = vld [vmem:[%s794 + $0xaa] sm:$0xff]
        %v911 = vld [vmem:[%s794 + $0xb2] sm:$0xff]
        %v912 = vld [vmem:[%s794 + $0xc2] sm:$0xff]
        %v913 = vld [vmem:[%s794 + $0xca] sm:$0xff]
        %v914 = vld [vmem:[%s794 + $0xda] sm:$0xff]
        %v915 = vld [vmem:[%s794 + $0xe2] sm:$0xff]
        %v916 = vld [vmem:[%s794 + $0xf2] sm:$0xff]
        %v917 = vld [vmem:[%s794 + $0xfa] sm:$0xff]
        %v918 = vld [vmem:[%s794 + $0x10a] sm:$0xff]
        %v919 = vld [vmem:[%s794 + $0x112] sm:$0xff]
        %v920 = vld [vmem:[%s794 + $0x122] sm:$0xff]
        %v921 = vld [vmem:[%s794 + $0x12a] sm:$0xff]
        %v922 = vld [vmem:[%s794 + $0x13a] sm:$0xff]
        %v923 = vld [vmem:[%s794 + $0x142] sm:$0xff]
        %v924 = vld [vmem:[%s794 + $0x152] sm:$0xff]
        %v925 = vld [vmem:[%s794 + $0x15a] sm:$0xff]
        %v926 = vld [vmem:[%s794 + $0x16a] sm:$0xff]
        %v927 = vld [vmem:[%s794 + $0x172] sm:$0xff]
        %v928 = vlaneseq
        %v929 = vshrl.u32 %v928, 7
        %v930 = vsub.s32 0, %v929
        %v931 = vrot.slane %v895, %v930
        %v932 = vmul.f32 %v896, %v931
        %v933 = vmul.f32 %v897, %v931
        %v934 = vmul.f32 %v898, %v931
        %v935 = vmul.f32 %v899, %v931
        %v936 = vmul.f32 %v900, %v931
        %v937 = vmul.f32 %v901, %v931
        %v938 = vmul.f32 %v902, %v931
        %v939 = vmul.f32 %v903, %v931
        %v940 = vmul.f32 %v904, %v931
        %v941 = vmul.f32 %v905, %v931
        %v942 = vmul.f32 %v906, %v931
        %v943 = vmul.f32 %v907, %v931
        %v944 = vmul.f32 %v908, %v931
        %v945 = vmul.f32 %v909, %v931
        %v946 = vmul.f32 %v910, %v931
        %v947 = vmul.f32 %v911, %v931
        %v948 = vmul.f32 %v912, %v931
        %v949 = vmul.f32 %v913, %v931
        %v950 = vmul.f32 %v914, %v931
        %v951 = vmul.f32 %v915, %v931
        %v952 = vmul.f32 %v916, %v931
        %v953 = vmul.f32 %v917, %v931
        %v954 = vmul.f32 %v918, %v931
        %v955 = vmul.f32 %v919, %v931
        %v956 = vmul.f32 %v920, %v931
        %v957 = vmul.f32 %v921, %v931
        %v958 = vmul.f32 %v922, %v931
        %v959 = vmul.f32 %v923, %v931
        %v960 = vmul.f32 %v924, %v931
        %v961 = vmul.f32 %v925, %v931
        %v962 = vmul.f32 %v926, %v931
        %v963 = vmul.f32 %v927, %v931
        %v964 = vadd.f32 %v863, %v932
        %v965 = vadd.f32 %v864, %v933
        %v966 = vadd.f32 %v865, %v934
        %v967 = vadd.f32 %v866, %v935
        %v968 = vadd.f32 %v867, %v936
        %v969 = vadd.f32 %v868, %v937
        %v970 = vadd.f32 %v869, %v938
        %v971 = vadd.f32 %v870, %v939
        %v972 = vadd.f32 %v871, %v940
        %v973 = vadd.f32 %v872, %v941
        %v974 = vadd.f32 %v873, %v942
        %v975 = vadd.f32 %v874, %v943
        %v976 = vadd.f32 %v875, %v944
        %v977 = vadd.f32 %v876, %v945
        %v978 = vadd.f32 %v877, %v946
        %v979 = vadd.f32 %v878, %v947
        %v980 = vadd.f32 %v879, %v948
        %v981 = vadd.f32 %v880, %v949
        %v982 = vadd.f32 %v881, %v950
        %v983 = vadd.f32 %v882, %v951
        %v984 = vadd.f32 %v883, %v952
        %v985 = vadd.f32 %v884, %v953
        %v986 = vadd.f32 %v885, %v954
        %v987 = vadd.f32 %v886, %v955
        %v988 = vadd.f32 %v887, %v956
        %v989 = vadd.f32 %v888, %v957
        %v990 = vadd.f32 %v889, %v958
        %v991 = vadd.f32 %v890, %v959
        %v992 = vadd.f32 %v891, %v960
        %v993 = vadd.f32 %v892, %v961
        %v994 = vadd.f32 %v893, %v962
        %v995 = vadd.f32 %v894, %v963
        %v996 = vld [vmem:[%s1 + $0x8] sm:$0x1]
        %v997 = vld [vmem:[%s794 + $0x4] sm:$0xff]
        %v998 = vld [vmem:[%s794 + $0xc] sm:$0xff]
        %v999 = vld [vmem:[%s794 + $0x1c] sm:$0xff]
        %v1000 = vld [vmem:[%s794 + $0x24] sm:$0xff]
        %v1001 = vld [vmem:[%s794 + $0x34] sm:$0xff]
        %v1002 = vld [vmem:[%s794 + $0x3c] sm:$0xff]
        %v1003 = vld [vmem:[%s794 + $0x4c] sm:$0xff]
        %v1004 = vld [vmem:[%s794 + $0x54] sm:$0xff]
        %v1005 = vld [vmem:[%s794 + $0x64] sm:$0xff]
        %v1006 = vld [vmem:[%s794 + $0x6c] sm:$0xff]
        %v1007 = vld [vmem:[%s794 + $0x7c] sm:$0xff]
        %v1008 = vld [vmem:[%s794 + $0x84] sm:$0xff]
        %v1009 = vld [vmem:[%s794 + $0x94] sm:$0xff]
        %v1010 = vld [vmem:[%s794 + $0x9c] sm:$0xff]
        %v1011 = vld [vmem:[%s794 + $0xac] sm:$0xff]
        %v1012 = vld [vmem:[%s794 + $0xb4] sm:$0xff]
        %v1013 = vld [vmem:[%s794 + $0xc4] sm:$0xff]
        %v1014 = vld [vmem:[%s794 + $0xcc] sm:$0xff]
        %v1015 = vld [vmem:[%s794 + $0xdc] sm:$0xff]
        %v1016 = vld [vmem:[%s794 + $0xe4] sm:$0xff]
        %v1017 = vld [vmem:[%s794 + $0xf4] sm:$0xff]
        %v1018 = vld [vmem:[%s794 + $0xfc] sm:$0xff]
        %v1019 = vld [vmem:[%s794 + $0x10c] sm:$0xff]
        %v1020 = vld [vmem:[%s794 + $0x114] sm:$0xff]
        %v1021 = vld [vmem:[%s794 + $0x124] sm:$0xff]
        %v1022 = vld [vmem:[%s794 + $0x12c] sm:$0xff]
        %v1023 = vld [vmem:[%s794 + $0x13c] sm:$0xff]
        %v1024 = vld [vmem:[%s794 + $0x144] sm:$0xff]
        %v1025 = vld [vmem:[%s794 + $0x154] sm:$0xff]
        %v1026 = vld [vmem:[%s794 + $0x15c] sm:$0xff]
        %v1027 = vld [vmem:[%s794 + $0x16c] sm:$0xff]
        %v1028 = vld [vmem:[%s794 + $0x174] sm:$0xff]
        %v1029 = vlaneseq
        %v1030 = vshrl.u32 %v1029, 7
        %v1031 = vsub.s32 0, %v1030
        %v1032 = vrot.slane %v996, %v1031
        %v1033 = vmul.f32 %v997, %v1032
        %v1034 = vmul.f32 %v998, %v1032
        %v1035 = vmul.f32 %v999, %v1032
        %v1036 = vmul.f32 %v1000, %v1032
        %v1037 = vmul.f32 %v1001, %v1032
        %v1038 = vmul.f32 %v1002, %v1032
        %v1039 = vmul.f32 %v1003, %v1032
        %v1040 = vmul.f32 %v1004, %v1032
        %v1041 = vmul.f32 %v1005, %v1032
        %v1042 = vmul.f32 %v1006, %v1032
        %v1043 = vmul.f32 %v1007, %v1032
        %v1044 = vmul.f32 %v1008, %v1032
        %v1045 = vmul.f32 %v1009, %v1032
        %v1046 = vmul.f32 %v1010, %v1032
        %v1047 = vmul.f32 %v1011, %v1032
        %v1048 = vmul.f32 %v1012, %v1032
        %v1049 = vmul.f32 %v1013, %v1032
        %v1050 = vmul.f32 %v1014, %v1032
        %v1051 = vmul.f32 %v1015, %v1032
        %v1052 = vmul.f32 %v1016, %v1032
        %v1053 = vmul.f32 %v1017, %v1032
        %v1054 = vmul.f32 %v1018, %v1032
        %v1055 = vmul.f32 %v1019, %v1032
        %v1056 = vmul.f32 %v1020, %v1032
        %v1057 = vmul.f32 %v1021, %v1032
        %v1058 = vmul.f32 %v1022, %v1032
        %v1059 = vmul.f32 %v1023, %v1032
        %v1060 = vmul.f32 %v1024, %v1032
        %v1061 = vmul.f32 %v1025, %v1032
        %v1062 = vmul.f32 %v1026, %v1032
        %v1063 = vmul.f32 %v1027, %v1032
        %v1064 = vmul.f32 %v1028, %v1032
        %v1065 = vadd.f32 %v964, %v1033
        %v1066 = vadd.f32 %v965, %v1034
        %v1067 = vadd.f32 %v966, %v1035
        %v1068 = vadd.f32 %v967, %v1036
        %v1069 = vadd.f32 %v968, %v1037
        %v1070 = vadd.f32 %v969, %v1038
        %v1071 = vadd.f32 %v970, %v1039
        %v1072 = vadd.f32 %v971, %v1040
        %v1073 = vadd.f32 %v972, %v1041
        %v1074 = vadd.f32 %v973, %v1042
        %v1075 = vadd.f32 %v974, %v1043
        %v1076 = vadd.f32 %v975, %v1044
        %v1077 = vadd.f32 %v976, %v1045
        %v1078 = vadd.f32 %v977, %v1046
        %v1079 = vadd.f32 %v978, %v1047
        %v1080 = vadd.f32 %v979, %v1048
        %v1081 = vadd.f32 %v980, %v1049
        %v1082 = vadd.f32 %v981, %v1050
        %v1083 = vadd.f32 %v982, %v1051
        %v1084 = vadd.f32 %v983, %v1052
        %v1085 = vadd.f32 %v984, %v1053
        %v1086 = vadd.f32 %v985, %v1054
        %v1087 = vadd.f32 %v986, %v1055
        %v1088 = vadd.f32 %v987, %v1056
        %v1089 = vadd.f32 %v988, %v1057
        %v1090 = vadd.f32 %v989, %v1058
        %v1091 = vadd.f32 %v990, %v1059
        %v1092 = vadd.f32 %v991, %v1060
        %v1093 = vadd.f32 %v992, %v1061
        %v1094 = vadd.f32 %v993, %v1062
        %v1095 = vadd.f32 %v994, %v1063
        %v1096 = vadd.f32 %v995, %v1064
        %v1097 = vld [vmem:[%s2] sm:$0xff]
        %v1098 = vld [vmem:[%s2 + $0x8] sm:$0xff]
        %v1099 = vld [vmem:[%s2 + $0x10] sm:$0xff]
        %v1100 = vld [vmem:[%s2 + $0x18] sm:$0xff]
        %v1101 = vld [vmem:[%s2 + $0x20] sm:$0xff]
        %v1102 = vld [vmem:[%s2 + $0x28] sm:$0xff]
        %v1103 = vld [vmem:[%s2 + $0x30] sm:$0xff]
        %v1104 = vld [vmem:[%s2 + $0x38] sm:$0xff]
        %v1105 = vld [vmem:[%s2 + $0x40] sm:$0xff]
        %v1106 = vld [vmem:[%s2 + $0x48] sm:$0xff]
        %v1107 = vld [vmem:[%s2 + $0x50] sm:$0xff]
        %v1108 = vld [vmem:[%s2 + $0x58] sm:$0xff]
        %v1109 = vld [vmem:[%s2 + $0x60] sm:$0xff]
        %v1110 = vld [vmem:[%s2 + $0x68] sm:$0xff]
        %v1111 = vld [vmem:[%s2 + $0x70] sm:$0xff]
        %v1112 = vld [vmem:[%s2 + $0x78] sm:$0xff]
        %v1113 = vld [vmem:[%s3] sm:$0x1]
        %v1115 = vlaneseq
        %v1116 = vshrl.u32 %v1115, 7
        %v1117 = vsub.s32 0, %v1116
        %v1118 = vrot.slane %v1113, %v1117
        %1120 = vmatprep.subr.mxu0 0.0
        %1121 = vmatpush1.msra.mxu0 %v1097
        %1122 = vmatprep.subr.mxu0 0.0
        %1123 = vmatpush1.msra.mxu0 %v1098
        %1124 = vmatprep.subr.mxu0 0.0
        %1125 = vmatpush1.msra.mxu0 %v1099
        %1126 = vmatprep.subr.mxu0 0.0
        %1127 = vmatpush1.msra.mxu0 %v1100
        %1128 = vmatprep.subr.mxu0 0.0
        %1129 = vmatpush1.msra.mxu0 %v1101
        %1130 = vmatprep.subr.mxu0 0.0
        %1131 = vmatpush1.msra.mxu0 %v1102
        %1132 = vmatprep.subr.mxu0 0.0
        %1133 = vmatpush1.msra.mxu0 %v1103
        %1134 = vmatprep.subr.mxu0 0.0
        %1135 = vmatpush1.msra.mxu0 %v1104
        %1136 = vmatprep.subr.mxu0 0.0
        %1137 = vmatpush1.msra.mxu0 %v1105
        %1138 = vmatprep.subr.mxu0 0.0
        %1139 = vmatpush1.msra.mxu0 %v1106
        %1140 = vmatprep.subr.mxu0 0.0
        %1141 = vmatpush1.msra.mxu0 %v1107
        %1142 = vmatprep.subr.mxu0 0.0
        %1143 = vmatpush1.msra.mxu0 %v1108
        %1144 = vmatprep.subr.mxu0 0.0
        %1145 = vmatpush1.msra.mxu0 %v1109
        %1146 = vmatprep.subr.mxu0 0.0
        %1147 = vmatpush1.msra.mxu0 %v1110
        %1148 = vmatprep.subr.mxu0 0.0
        %1149 = vmatpush1.msra.mxu0 %v1111
        %1150 = vmatprep.subr.mxu0 0.0
        %1151 = vmatpush1.msra.mxu0 %v1112
        %1152 = vmatprep.subr.mxu0 0.0
        %1153 = vmatpush1.msra.mxu0 0.0
        %1154 = vmatprep.subr.mxu0 0.0
        %1155 = vmatpush1.msra.mxu0 0.0
        %1156 = vmatprep.subr.mxu0 0.0
        %1157 = vmatpush1.msra.mxu0 0.0
        %1158 = vmatprep.subr.mxu0 0.0
        %1159 = vmatpush1.msra.mxu0 0.0
        %1160 = vmatprep.subr.mxu0 0.0
        %1161 = vmatpush1.msra.mxu0 0.0
        %1162 = vmatprep.subr.mxu0 0.0
        %1163 = vmatpush1.msra.mxu0 0.0
        %1164 = vmatprep.subr.mxu0 0.0
        %1165 = vmatpush1.msra.mxu0 0.0
        %1166 = vmatprep.subr.mxu0 0.0
        %1167 = vmatpush1.msra.mxu0 0.0
        %1168 = vmatprep.subr.mxu0 0.0
        %1169 = vmatpush1.msra.mxu0 0.0
        %1170 = vmatprep.subr.mxu0 0.0
        %1171 = vmatpush1.msra.mxu0 0.0
        %1172 = vmatprep.subr.mxu0 0.0
        %1173 = vmatpush1.msra.mxu0 0.0
        %1174 = vmatprep.subr.mxu0 0.0
        %1175 = vmatpush1.msra.mxu0 0.0
        %1176 = vmatprep.subr.mxu0 0.0
        %1177 = vmatpush1.msra.mxu0 0.0
        %1178 = vmatprep.subr.mxu0 0.0
        %1179 = vmatpush1.msra.mxu0 0.0
        %1180 = vmatprep.subr.mxu0 0.0
        %1181 = vmatpush1.msra.mxu0 0.0
        %1182 = vmatprep.subr.mxu0 0.0
        %1183 = vmatpush1.msra.mxu0 0.0
        %1184 = vmatprep.mubr.f32.mxu0 0.0
        %1185 = vmatmul.mubr.f32.gmra.mrb[0].mxu0 %v1065
        %v1186 = vpop.f32.mrb[0].mxu0
        %v1187 = vadd.f32 %v1118, %v1186
        %v1188 = vpop.f32.mrb[0].mxu0
        %1189 = vmatprep.mubr.f32.mxu0 0.0
        %1190 = vmatmul.mubr.f32.gmra.mrb[0].mxu0 %v1066
        %v1191 = vpop.f32.mrb[0].mxu0
        %v1192 = vadd.f32 %v1118, %v1191
        %v1193 = vpop.f32.mrb[0].mxu0
        %1194 = vmatprep.mubr.f32.mxu0 0.0
        %1195 = vmatmul.mubr.f32.gmra.mrb[0].mxu0 %v1067
        %v1196 = vpop.f32.mrb[0].mxu0
        %v1197 = vadd.f32 %v1118, %v1196
        %v1198 = vpop.f32.mrb[0].mxu0
        %1199 = vmatprep.mubr.f32.mxu0 0.0
        %1200 = vmatmul.mubr.f32.gmra.mrb[0].mxu0 %v1068
        %v1201 = vpop.f32.mrb[0].mxu0
        %v1202 = vadd.f32 %v1118, %v1201
        %v1203 = vpop.f32.mrb[0].mxu0
        %1204 = vmatprep.mubr.f32.mxu0 0.0
        %1205 = vmatmul.mubr.f32.gmra.mrb[0].mxu0 %v1069
        %v1206 = vpop.f32.mrb[0].mxu0
        %v1207 = vadd.f32 %v1118, %v1206
        %v1208 = vpop.f32.mrb[0].mxu0
        %1209 = vmatprep.mubr.f32.mxu0 0.0
        %1210 = vmatmul.mubr.f32.gmra.mrb[0].mxu0 %v1070
        %v1211 = vpop.f32.mrb[0].mxu0
        %v1212 = vadd.f32 %v1118, %v1211
        %v1213 = vpop.f32.mrb[0].mxu0
        %1214 = vmatprep.mubr.f32.mxu0 0.0
        %1215 = vmatmul.mubr.f32.gmra.mrb[0].mxu0 %v1071
        %v1216 = vpop.f32.mrb[0].mxu0
        %v1217 = vadd.f32 %v1118, %v1216
        %v1218 = vpop.f32.mrb[0].mxu0
        %1219 = vmatprep.mubr.f32.mxu0 0.0
        %1220 = vmatmul.mubr.f32.gmra.mrb[0].mxu0 %v1072
        %v1221 = vpop.f32.mrb[0].mxu0
        %v1222 = vadd.f32 %v1118, %v1221
        %v1223 = vpop.f32.mrb[0].mxu0
        %1224 = vmatprep.mubr.f32.mxu0 0.0
        %1225 = vmatmul.mubr.f32.gmra.mrb[0].mxu0 %v1073
        %v1226 = vpop.f32.mrb[0].mxu0
        %v1227 = vadd.f32 %v1118, %v1226
        %v1228 = vpop.f32.mrb[0].mxu0
        %1229 = vmatprep.mubr.f32.mxu0 0.0
        %1230 = vmatmul.mubr.f32.gmra.mrb[0].mxu0 %v1074
        %v1231 = vpop.f32.mrb[0].mxu0
        %v1232 = vadd.f32 %v1118, %v1231
        %v1233 = vpop.f32.mrb[0].mxu0
        %1234 = vmatprep.mubr.f32.mxu0 0.0
        %1235 = vmatmul.mubr.f32.gmra.mrb[0].mxu0 %v1075
        %v1236 = vpop.f32.mrb[0].mxu0
        %v1237 = vadd.f32 %v1118, %v1236
        %v1238 = vpop.f32.mrb[0].mxu0
        %1239 = vmatprep.mubr.f32.mxu0 0.0
        %1240 = vmatmul.mubr.f32.gmra.mrb[0].mxu0 %v1076
        %v1241 = vpop.f32.mrb[0].mxu0
        %v1242 = vadd.f32 %v1118, %v1241
        %v1243 = vpop.f32.mrb[0].mxu0
        %1244 = vmatprep.mubr.f32.mxu0 0.0
        %1245 = vmatmul.mubr.f32.gmra.mrb[0].mxu0 %v1077
        %v1246 = vpop.f32.mrb[0].mxu0
        %v1247 = vadd.f32 %v1118, %v1246
        %v1248 = vpop.f32.mrb[0].mxu0
        %1249 = vmatprep.mubr.f32.mxu0 0.0
        %1250 = vmatmul.mubr.f32.gmra.mrb[0].mxu0 %v1078
        %v1251 = vpop.f32.mrb[0].mxu0
        %v1252 = vadd.f32 %v1118, %v1251
        %v1253 = vpop.f32.mrb[0].mxu0
        %1254 = vmatprep.mubr.f32.mxu0 0.0
        %1255 = vmatmul.mubr.f32.gmra.mrb[0].mxu0 %v1079
        %v1256 = vpop.f32.mrb[0].mxu0
        %v1257 = vadd.f32 %v1118, %v1256
        %v1258 = vpop.f32.mrb[0].mxu0
        %1259 = vmatprep.mubr.f32.mxu0 0.0
        %1260 = vmatmul.mubr.f32.gmra.mrb[0].mxu0 %v1080
        %v1261 = vpop.f32.mrb[0].mxu0
        %v1262 = vadd.f32 %v1118, %v1261
        %v1263 = vpop.f32.mrb[0].mxu0
        %1264 = vmatprep.mubr.f32.mxu0 0.0
        %1265 = vmatmul.mubr.f32.gmra.mrb[0].mxu0 %v1081
        %v1266 = vpop.f32.mrb[0].mxu0
        %v1267 = vadd.f32 %v1118, %v1266
        %v1268 = vpop.f32.mrb[0].mxu0
        %1269 = vmatprep.mubr.f32.mxu0 0.0
        %1270 = vmatmul.mubr.f32.gmra.mrb[0].mxu0 %v1082
        %v1271 = vpop.f32.mrb[0].mxu0
        %v1272 = vadd.f32 %v1118, %v1271
        %v1273 = vpop.f32.mrb[0].mxu0
        %1274 = vmatprep.mubr.f32.mxu0 0.0
        %1275 = vmatmul.mubr.f32.gmra.mrb[0].mxu0 %v1083
        %v1276 = vpop.f32.mrb[0].mxu0
        %v1277 = vadd.f32 %v1118, %v1276
        %v1278 = vpop.f32.mrb[0].mxu0
        %1279 = vmatprep.mubr.f32.mxu0 0.0
        %1280 = vmatmul.mubr.f32.gmra.mrb[0].mxu0 %v1084
        %v1281 = vpop.f32.mrb[0].mxu0
        %v1282 = vadd.f32 %v1118, %v1281
        %v1283 = vpop.f32.mrb[0].mxu0
        %1284 = vmatprep.mubr.f32.mxu0 0.0
        %1285 = vmatmul.mubr.f32.gmra.mrb[0].mxu0 %v1085
        %v1286 = vpop.f32.mrb[0].mxu0
        %v1287 = vadd.f32 %v1118, %v1286
        %v1288 = vpop.f32.mrb[0].mxu0
        %1289 = vmatprep.mubr.f32.mxu0 0.0
        %1290 = vmatmul.mubr.f32.gmra.mrb[0].mxu0 %v1086
        %v1291 = vpop.f32.mrb[0].mxu0
        %v1292 = vadd.f32 %v1118, %v1291
        %v1293 = vpop.f32.mrb[0].mxu0
        %1294 = vmatprep.mubr.f32.mxu0 0.0
        %1295 = vmatmul.mubr.f32.gmra.mrb[0].mxu0 %v1087
        %v1296 = vpop.f32.mrb[0].mxu0
        %v1297 = vadd.f32 %v1118, %v1296
        %v1298 = vpop.f32.mrb[0].mxu0
        %1299 = vmatprep.mubr.f32.mxu0 0.0
        %1300 = vmatmul.mubr.f32.gmra.mrb[0].mxu0 %v1088
        %v1301 = vpop.f32.mrb[0].mxu0
        %v1302 = vadd.f32 %v1118, %v1301
        %v1303 = vpop.f32.mrb[0].mxu0
        %1304 = vmatprep.mubr.f32.mxu0 0.0
        %1305 = vmatmul.mubr.f32.gmra.mrb[0].mxu0 %v1089
        %v1306 = vpop.f32.mrb[0].mxu0
        %v1307 = vadd.f32 %v1118, %v1306
        %v1308 = vpop.f32.mrb[0].mxu0
        %1309 = vmatprep.mubr.f32.mxu0 0.0
        %1310 = vmatmul.mubr.f32.gmra.mrb[0].mxu0 %v1090
        %v1311 = vpop.f32.mrb[0].mxu0
        %v1312 = vadd.f32 %v1118, %v1311
        %v1313 = vpop.f32.mrb[0].mxu0
        %1314 = vmatprep.mubr.f32.mxu0 0.0
        %1315 = vmatmul.mubr.f32.gmra.mrb[0].mxu0 %v1091
        %v1316 = vpop.f32.mrb[0].mxu0
        %v1317 = vadd.f32 %v1118, %v1316
        %v1318 = vpop.f32.mrb[0].mxu0
        %1319 = vmatprep.mubr.f32.mxu0 0.0
        %1320 = vmatmul.mubr.f32.gmra.mrb[0].mxu0 %v1092
        %v1321 = vpop.f32.mrb[0].mxu0
        %v1322 = vadd.f32 %v1118, %v1321
        %v1323 = vpop.f32.mrb[0].mxu0
        %1324 = vmatprep.mubr.f32.mxu0 0.0
        %1325 = vmatmul.mubr.f32.gmra.mrb[0].mxu0 %v1093
        %v1326 = vpop.f32.mrb[0].mxu0
        %v1327 = vadd.f32 %v1118, %v1326
        %v1328 = vpop.f32.mrb[0].mxu0
        %1329 = vmatprep.mubr.f32.mxu0 0.0
        %1330 = vmatmul.mubr.f32.gmra.mrb[0].mxu0 %v1094
        %v1331 = vpop.f32.mrb[0].mxu0
        %v1332 = vadd.f32 %v1118, %v1331
        %v1333 = vpop.f32.mrb[0].mxu0
        %1334 = vmatprep.mubr.f32.mxu0 0.0
        %1335 = vmatmul.mubr.f32.gmra.mrb[0].mxu0 %v1095
        %v1336 = vpop.f32.mrb[0].mxu0
        %v1337 = vadd.f32 %v1118, %v1336
        %v1338 = vpop.f32.mrb[0].mxu0
        %1339 = vmatprep.mubr.f32.mxu0 0.0
        %1340 = vmatmul.mubr.f32.gmra.mrb[0].mxu0 %v1096
        %v1341 = vpop.f32.mrb[0].mxu0
        %v1342 = vadd.f32 %v1118, %v1341
        %v1343 = vpop.f32.mrb[0].mxu0
        %1344 = vdwg.mxu0
        %1345 = vst [vmem:[%s209] sm:$0xff] %v1187
        %1346 = vst [vmem:[%s209 + $0x8] sm:$0xff] %v1192
        %1347 = vst [vmem:[%s209 + $0x10] sm:$0xff] %v1197
        %1348 = vst [vmem:[%s209 + $0x18] sm:$0xff] %v1202
        %1349 = vst [vmem:[%s209 + $0x20] sm:$0xff] %v1207
        %1350 = vst [vmem:[%s209 + $0x28] sm:$0xff] %v1212
        %1351 = vst [vmem:[%s209 + $0x30] sm:$0xff] %v1217
        %1352 = vst [vmem:[%s209 + $0x38] sm:$0xff] %v1222
        %1353 = vst [vmem:[%s209 + $0x40] sm:$0xff] %v1227
        %1354 = vst [vmem:[%s209 + $0x48] sm:$0xff] %v1232
        %1355 = vst [vmem:[%s209 + $0x50] sm:$0xff] %v1237
        %1356 = vst [vmem:[%s209 + $0x58] sm:$0xff] %v1242
        %1357 = vst [vmem:[%s209 + $0x60] sm:$0xff] %v1247
        %1358 = vst [vmem:[%s209 + $0x68] sm:$0xff] %v1252
        %1359 = vst [vmem:[%s209 + $0x70] sm:$0xff] %v1257
        %1360 = vst [vmem:[%s209 + $0x78] sm:$0xff] %v1262
        %1361 = vst [vmem:[%s209 + $0x80] sm:$0xff] %v1267
        %1362 = vst [vmem:[%s209 + $0x88] sm:$0xff] %v1272
        %1363 = vst [vmem:[%s209 + $0x90] sm:$0xff] %v1277
        %1364 = vst [vmem:[%s209 + $0x98] sm:$0xff] %v1282
        %1365 = vst [vmem:[%s209 + $0xa0] sm:$0xff] %v1287
        %1366 = vst [vmem:[%s209 + $0xa8] sm:$0xff] %v1292
        %1367 = vst [vmem:[%s209 + $0xb0] sm:$0xff] %v1297
        %1368 = vst [vmem:[%s209 + $0xb8] sm:$0xff] %v1302
        %1369 = vst [vmem:[%s209 + $0xc0] sm:$0xff] %v1307
        %1370 = vst [vmem:[%s209 + $0xc8] sm:$0xff] %v1312
        %1371 = vst [vmem:[%s209 + $0xd0] sm:$0xff] %v1317
        %1372 = vst [vmem:[%s209 + $0xd8] sm:$0xff] %v1322
        %1373 = vst [vmem:[%s209 + $0xe0] sm:$0xff] %v1327
        %1374 = vst [vmem:[%s209 + $0xe8] sm:$0xff] %v1332
        %1375 = vst [vmem:[%s209 + $0xf0] sm:$0xff] %v1337
        %1376 = vst [vmem:[%s209 + $0xf8] sm:$0xff] %v1342
        %s1377 = sand.u32 %s131, 1
        %s1378 = scalar_lea.sflag [#allocation3], %s1377
        %s1379 = sand.u32 %s131, 1
        %s1380 = smul.addr %s1379, 256
        %s1381 = scalar_lea.vmem [#allocation2], %s1380
        // Predicated region
        $region37: #{tpu_custom_call.1} parent=35 // pred_check
          %p1382 = pneg %p141
        $region38: #{tpu_custom_call.1} parent=35 // pred_check_branch
          %1384 = sbr.rel (%p1382) target = $region40
        $region39: #{tpu_custom_call.1} parent=35 // pred_region
          %s1385 = smul.u32 16, %s23
          %s1387 = ssub.s32 4096, 4096
          %1388 = vsyncadd %s1378, %s1387
          %s1389 = smul.addr %s1385, 2
          %s1390 = smul.addr %s22, 32
          %s1391 = sadd.s32 %s1389, %s1390
          %s1392 = smul.addr %s1391, 128
          %s1393 = scalar_lea.hbm %s4, %s1392
          %s1394 = sshll.u32 %s1381, 4
          %s1395 = int_to_ptr.vmem [resolvable:$true] %s1394
          %1400 = dma.vmem_to_hbm [thread:$0]  %s1395, 4096, %s1393, %s1378, 128, 128, 8
        $region40: #{tpu_custom_call.1} parent=35 // pred_fallthru
          _
      $region36: #{tpu_custom_call.1} parent=5 // pred_fallthru
        _
      %p1401 = scmp.le.s32.totalorder 2, %s13
      // Predicated region
      $region41: #{tpu_custom_call.1} parent=5 // pred_check
        %p1402 = pneg %p1401
      $region42: #{tpu_custom_call.1} parent=5 // pred_check_branch
        %1404 = sbr.rel (%p1402) target = $region44
      $region43: #{tpu_custom_call.1} parent=5 // pred_region
        %s1405 = ssub.s32 %s13, 2
        // Predicated region
        $region45: #{tpu_custom_call.1} parent=43 // pred_check
          %p1406 = pneg %p147
        $region46: #{tpu_custom_call.1} parent=43 // pred_check_branch
          %1408 = sbr.rel (%p1406) target = $region48
        $region47: #{tpu_custom_call.1} parent=43 // pred_region
          %s1409 = sand.u32 %s132, 1
          %s1410 = scalar_lea.sflag [#allocation3], %s1409
          %s1411 = sand.u32 %s132, 1
          %s1412 = smul.addr %s1411, 256
          %s1413 = scalar_lea.vmem [#allocation2], %s1412
          %1414 = dma.done %s1410, 4096
        $region48: #{tpu_custom_call.1} parent=43 // pred_fallthru
          _
      $region44: #{tpu_custom_call.1} parent=5 // pred_fallthru
        _
    $region6: #{tpu_custom_call.1} parent=1 // loop_footer
      %s17 = sadd.s32 1, %s13
    $region7: #{tpu_custom_call.1} parent=1 // loop_footer_branch
      %12 = sbr.rel target = $region3
    $region8: #{tpu_custom_call.1} parent=1 // loop_exit
      _
    %1415 = vsyncpa [#allocation3], 1
    %s1416 = scalar_lea.sflag [#allocation3], 1
    %1417 = vsyncpa %s1416, 1

</llo_original>
